<compile_context>
chip_gen: v7x
topology: tpu7x:2x2x1
jax: 0.10.0
libtpu: 0.0.40
codegen_flags: <defaults>
</compile_context>

<pallas_src>
import functools
import re

import numpy as np
import jax
import jax.numpy as jnp
from jax.experimental import pallas as pl
from jax.experimental.pallas import tpu as pltpu


# ----------------------------- Pallas kernel ------------------------------- #
def _fdm_kernel(xq_ref, kp_pos_ref, kp_neg_ref, xkg1_ref, xkg2_ref, gq_ref,
                b1_ref, b2_ref, out_ref, *, exp_dtype):
    f32, bf16 = jnp.float32, jnp.bfloat16
    cin = b1_ref.shape[0]

    xq = xq_ref[0]                          # (Cin, TQ)  f32 — query block + residual
    xq_bf = xq.astype(bf16)
    gq = gq_ref[0]                          # (1, TQ)    f32 — gate at query positions

    def branch(kp_ref, xkg_ref, gate_row, bias_col):
        # att^T: (HW, TQ) — keys on sublanes, queries on lanes. Weight map is already
        # folded into kp_ref host-side, so this is the scaled logit directly.
        att = jax.lax.dot_general(kp_ref[0], xq_bf,
                                  (((1,), (0,)), ((), ())),
                                  preferred_element_type=f32)           # (HW, TQ)
        m = jnp.max(att, axis=0, keepdims=True)                         # (1, TQ)
        # bf16 exp on v6e/v7x (packed EUP); f32 on v5e/older.
        e = jnp.exp((att - m).astype(exp_dtype)).astype(bf16)           # (HW, TQ)
        # one canonical K=HW matmul: rows [:Cin] = numerator, row [Cin] = denominator
        res = jax.lax.dot_general(xkg_ref[0], e,
                                  (((1,), (0,)), ((), ())),
                                  preferred_element_type=f32)           # (Cin+1, TQ)
        num = res[:cin]                                                 # (Cin, TQ)
        denom = res[cin:cin + 1]                                        # (1, TQ)
        scale = gate_row * pl.reciprocal(denom, approx=True)            # (1, TQ)
        return num * scale + bias_col                                   # BN applied

    pos = branch(kp_pos_ref, xkg1_ref, gq, b1_ref[...])
    neg = branch(kp_neg_ref, xkg2_ref, 1.0 - gq, b2_ref[...])
    out_ref[0] = pos + xq + neg                                         # + residual


# ----------------------------- glue / wrapper ------------------------------ #
def sep_conv_head(x, dw_w, pw_w):
    # SepConvHead(1, C, C): depthwise 3x3 (pad 1, no bias) + pointwise 1x1 -> 1 ch
    cin = x.shape[1]
    y = jax.lax.conv_general_dilated(
        x, dw_w, window_strides=(1, 1), padding=((1, 1), (1, 1)),
        dimension_numbers=("NCHW", "OIHW", "NCHW"), feature_group_count=cin)
    y = jax.lax.conv_general_dilated(
        y, pw_w, window_strides=(1, 1), padding=((0, 0), (0, 0)),
        dimension_numbers=("NCHW", "OIHW", "NCHW"))
    return y


def _bn_fold(gamma, beta, mean, var, eps=1e-5):
    scale = gamma / jnp.sqrt(var + eps)
    bias = beta - mean * scale
    return scale, bias


def _tpu_flags():
    """Returns (physical VMEM bytes, use bf16 exp) for the local TPU generation."""
    gen = None
    try:
        kind = jax.devices()[0].device_kind
        m = re.search(r"(\d+)", kind)
        if m:
            gen = int(m.group(1))
    except Exception:
        pass
    vmem_cap = None
    try:
        vmem_cap = int(pltpu.get_tpu_info().vmem_capacity_bytes)
    except Exception:
        pass
    if vmem_cap is None:
        # conservative fallbacks: 64 MiB (v7x-sized) unless we know it's an older gen
        vmem_cap = (128 << 20) if (gen is not None and gen <= 6) else (64 << 20)
    bf16_exp = gen is not None and gen >= 6     # bf16 EUP exists on v6e/v7x only
    return vmem_cap, bf16_exp


def _pick_tq(hw, cin, vmem_limit_bytes):
    """Largest query tile whose att-tile intermediates fit the VMEM budget."""
    # key-side residents (double-buffered by BlockSpec): 2x kproj bf16 + 2x xkg bf16
    key_bytes = 2 * (2 * hw * cin * 2 + 2 * hw * (cin + 1) * 2)
    budget = max(vmem_limit_bytes - key_bytes - (6 << 20), 1 << 20)
    bytes_per_att_elem = 10                      # att f32 + exp + pipelining slack
    cap = max(budget // (bytes_per_att_elem * hw), 8)
    for align in (128, 8, 1):                    # prefer lane-dense (multiple of 128)
        divs = [d for d in range(align, hw + 1, align) if hw % d == 0 and d <= cap]
        if divs:
            return int(max(divs))
    return int(hw)


def fdm_v3_pallas(x, click_maps, gate_pos, params, tq=None):
    b, cin, h, w = x.shape
    hw = h * w
    f32, bf16 = jnp.float32, jnp.bfloat16

    vmem_cap, bf16_exp = _tpu_flags()
    vmem_limit = int(vmem_cap * 0.85)            # leave headroom for Mosaic scratch
    if tq is None:
        tq = _pick_tq(hw, cin, vmem_limit)
    assert hw % tq == 0
    nq = hw // tq

    # channel-major, spatially flattened views; HW on the lane axis for outputs.
    x_cm = x.reshape(b, cin, hw).astype(f32)                            # queries + residual

    gp_row = gate_pos.reshape(b, 1, hw).astype(f32)
    gn_row = 1.0 - gp_row
    cpos = click_maps[:, 0].reshape(b, 1, hw).astype(f32)
    cneg = click_maps[:, 1].reshape(b, 1, hw).astype(f32)
    wpos = cpos + (gp_row > 0.8).astype(f32)                            # key weight maps
    wneg = cneg + (gn_row > 0.8).astype(f32)

    # attention projection folded: att[i,j] = x_i^T (Wt^T Wp) x_j; weight maps folded
    # into the key-side projection so the kernel never materializes a scaled-logit temp.
    wtp = params["wt"].T @ params["wp"]                                 # (cin, cin)
    kproj = jnp.einsum("ck,bkj->bjc", wtp, x_cm)                        # (b, hw, cin)
    kp_pos = (kproj * jnp.transpose(wpos, (0, 2, 1))).astype(bf16)
    kp_neg = (kproj * jnp.transpose(wneg, (0, 2, 1))).astype(bf16)

    # value projections (g -> z -> BN scale) folded into one matrix per branch; an
    # all-ones channel makes the branch matmul emit the softmax row-sum as row cin.
    s1, b1 = _bn_fold(*params["bn1"])
    s2, b2 = _bn_fold(*params["bn2"])

    def value_keys(wz, scale):
        wgz = scale[:, None] * (wz @ params["wg"])                      # (cin, cin)
        vk = jnp.einsum("ck,bkj->bcj", wgz, x_cm)                       # (b, cin, hw)
        ones = jnp.ones((b, 1, hw), f32)
        return jnp.concatenate([vk, ones], axis=1).astype(bf16)         # (b, cin+1, hw)

    xkg1 = value_keys(params["wz"], s1)
    xkg2 = value_keys(params["wz2"], s2)
    b1c = b1.reshape(cin, 1).astype(f32)
    b2c = b2.reshape(cin, 1).astype(f32)

    kernel = functools.partial(_fdm_kernel, exp_dtype=bf16 if bf16_exp else f32)
    shared = lambda shape: pl.BlockSpec(shape, lambda bi, qi: (0, 0))

    out_cm = pl.pallas_call(
        kernel,
        out_shape=jax.ShapeDtypeStruct((b, cin, hw), f32),
        grid=(b, nq),
        in_specs=[
            pl.BlockSpec((1, cin, tq), lambda bi, qi: (bi, 0, qi)),      # x queries / residual
            pl.BlockSpec((1, hw, cin), lambda bi, qi: (bi, 0, 0)),       # pos key proj (Wtp x * wpos)
            pl.BlockSpec((1, hw, cin), lambda bi, qi: (bi, 0, 0)),       # neg key proj (Wtp x * wneg)
            pl.BlockSpec((1, cin + 1, hw), lambda bi, qi: (bi, 0, 0)),   # value keys branch 1 (+ones row)
            pl.BlockSpec((1, cin + 1, hw), lambda bi, qi: (bi, 0, 0)),   # value keys branch 2 (+ones row)
            pl.BlockSpec((1, 1, tq), lambda bi, qi: (bi, 0, qi)),        # gate at query rows
            shared((cin, 1)),                                            # bn1 bias
            shared((cin, 1)),                                            # bn2 bias
        ],
        out_specs=pl.BlockSpec((1, cin, tq), lambda bi, qi: (bi, 0, qi)),
        compiler_params=pltpu.CompilerParams(
            dimension_semantics=("parallel", "parallel"),
            vmem_limit_bytes=vmem_limit),
    )(x_cm, kp_pos, kp_neg, xkg1, xkg2, gp_row, b1c, b2c)

    out = out_cm.reshape(b, cin, h, w)
    return out, gate_pos, 1.0 - gate_pos


# --------------------------- pure-JAX reference ----------------------------- #
def fdm_v3_reference(x, click_maps, gate_pos, params):
    b, cin, h, w = x.shape
    hw = h * w
    cp = params["wt"].shape[0]
    conv1x1 = lambda inp, wmat: jnp.einsum("bchw,oc->bohw", inp, wmat)

    t = conv1x1(x, params["wt"])
    p = conv1x1(x, params["wp"])
    g = conv1x1(x, params["wg"])
    t_ = jnp.transpose(t.reshape(b, cp, hw), (0, 2, 1))
    p_ = p.reshape(b, cp, hw)
    g_ = jnp.transpose(g.reshape(b, cp, hw), (0, 2, 1))

    gate_neg = 1.0 - gate_pos
    wpos = click_maps[:, 0:1] + (gate_pos > 0.8).astype(jnp.float32)
    wneg = click_maps[:, 1:2] + (gate_neg > 0.8).astype(jnp.float32)
    att = jnp.einsum("bic,bcj->bij", t_, p_)

    def bn(inp, gamma, beta, mean, var, eps=1e-5):
        scale = gamma / jnp.sqrt(var + eps)
        return inp * scale.reshape(1, -1, 1, 1) + (beta - mean * scale).reshape(1, -1, 1, 1)

    def branch(wmap, gmap, wz, bn_params):
        a = att.reshape(b, hw, h, w) * wmap
        a = jax.nn.softmax(a.reshape(b, hw, hw), axis=2)
        a = a.reshape(b, h, w, hw) * jnp.transpose(gmap, (0, 2, 3, 1))
        a = a.reshape(b, hw, hw)
        xb = jnp.einsum("bij,bjc->bic", a, g_)
        xb = jnp.transpose(xb, (0, 2, 1)).reshape(b, cp, h, w)
        return bn(conv1x1(xb, wz), *bn_params)

    xpos = branch(wpos, gate_pos, params["wz"], params["bn1"])
    xneg = branch(wneg, gate_neg, params["wz2"], params["bn2"])
    return xpos + x + xneg, gate_pos, gate_neg


# ---------------------------------- main ------------------------------------ #
if __name__ == "__main__":
    inplanes, planes = 8, 4
    B, H, W = 2, 16, 16

    key = jax.random.PRNGKey(0)
    ks = jax.random.split(key, 18)

    x = jax.random.normal(ks[0], (B, inplanes, H, W), jnp.float32)
    click_maps = (jax.random.uniform(ks[1], (B, 2, H, W)) < 0.1).astype(jnp.float32)

    params = {
        "wt":  0.1 * jax.random.normal(ks[2], (planes, inplanes), jnp.float32),
        "wp":  0.1 * jax.random.normal(ks[3], (planes, inplanes), jnp.float32),
        "wg":  0.1 * jax.random.normal(ks[4], (planes, inplanes), jnp.float32),
        "wz":  0.1 * jax.random.normal(ks[5], (inplanes, planes), jnp.float32),
        "wz2": 0.1 * jax.random.normal(ks[6], (inplanes, planes), jnp.float32),
        # BatchNorm (eval mode): (gamma, beta, running_mean, running_var)
        "bn1": (1.0 + 0.1 * jax.random.normal(ks[7], (inplanes,), jnp.float32),
                0.1 * jax.random.normal(ks[8], (inplanes,), jnp.float32),
                0.05 * jax.random.normal(ks[9], (inplanes,), jnp.float32),
                1.0 + 0.1 * jnp.abs(jax.random.normal(ks[10], (inplanes,), jnp.float32))),
        "bn2": (1.0 + 0.1 * jax.random.normal(ks[11], (inplanes,), jnp.float32),
                0.1 * jax.random.normal(ks[12], (inplanes,), jnp.float32),
                0.05 * jax.random.normal(ks[13], (inplanes,), jnp.float32),
                1.0 + 0.1 * jnp.abs(jax.random.normal(ks[14], (inplanes,), jnp.float32))),
    }
    # SepConvHead(1, inplanes, inplanes) weights: depthwise 3x3 + pointwise 1x1
    dw_w = 0.1 * jax.random.normal(ks[15], (inplanes, 1, 3, 3), jnp.float32)
    pw_w = 0.1 * jax.random.normal(ks[16], (1, inplanes, 1, 1), jnp.float32)

    # gate head computed once in plain-JAX glue (tiny 3x3 depthwise + 1x1 conv)
    gate_pos = jax.nn.sigmoid(sep_conv_head(x, dw_w, pw_w))            # (B, 1, H, W)

    out, gpos, gneg = fdm_v3_pallas(x, click_maps, gate_pos, params)
    out = jax.block_until_ready(out)

    ref_out, ref_gpos, ref_gneg = fdm_v3_reference(x, click_maps, gate_pos, params)
    np.testing.assert_allclose(np.asarray(out), np.asarray(ref_out),
                               rtol=2e-2, atol=2e-2)
    np.testing.assert_allclose(np.asarray(gpos), np.asarray(ref_gpos), rtol=1e-5, atol=1e-5)
    np.testing.assert_allclose(np.asarray(gneg), np.asarray(ref_gneg), rtol=1e-5, atol=1e-5)

    print("KERNEL_OK")
</pallas_src>

<mosaic_0001>
module attributes {stable_mosaic.version = 11 : i64} {
  func.func @_fdm_kernel(%arg0: i32, %arg1: i32, %arg2: memref<1x8x256xf32, #tpu.memory_space<vmem>>, %arg3: memref<1x256x8xbf16, #tpu.memory_space<vmem>>, %arg4: memref<1x256x8xbf16, #tpu.memory_space<vmem>>, %arg5: memref<1x9x256xbf16, #tpu.memory_space<vmem>>, %arg6: memref<1x9x256xbf16, #tpu.memory_space<vmem>>, %arg7: memref<1x1x256xf32, #tpu.memory_space<vmem>>, %arg8: memref<8x1xf32, #tpu.memory_space<vmem>>, %arg9: memref<8x1xf32, #tpu.memory_space<vmem>>, %arg10: memref<1x8x256xf32, #tpu.memory_space<vmem>>) attributes {dimension_semantics = [#tpu.dimension_semantics<parallel>, #tpu.dimension_semantics<parallel>], iteration_bounds = array<i64: 2, 1>, scalar_prefetch = 0 : i64, scratch_operands = 0 : i64, tpu.core_type = #tpu.core_type<tc>, window_params = [{transform_indices = @transform_0, window_bounds = array<i64: 1, 8, 256>}, {transform_indices = @transform_1, window_bounds = array<i64: 1, 256, 8>}, {transform_indices = @transform_2, window_bounds = array<i64: 1, 256, 8>}, {transform_indices = @transform_3, window_bounds = array<i64: 1, 9, 256>}, {transform_indices = @transform_4, window_bounds = array<i64: 1, 9, 256>}, {transform_indices = @transform_5, window_bounds = array<i64: 1, 1, 256>}, {pipeline_mode = #tpu.pipeline_mode<synchronous>, transform_indices = @transform_6, window_bounds = array<i64: 8, 1>}, {pipeline_mode = #tpu.pipeline_mode<synchronous>, transform_indices = @transform_7, window_bounds = array<i64: 8, 1>}, {transform_indices = @transform_8, window_bounds = array<i64: 1, 8, 256>}]} {
    %c0 = arith.constant 0 : index
    %c0_0 = arith.constant 0 : index
    %c0_1 = arith.constant 0 : index
    %0 = vector.load %arg2[%c0, %c0_0, %c0_1] : memref<1x8x256xf32, #tpu.memory_space<vmem>>, vector<1x8x256xf32>
    %1 = vector.shape_cast %0 : vector<1x8x256xf32> to vector<8x256xf32>
    %2 = arith.truncf %1 : vector<8x256xf32> to vector<8x256xbf16>
    %c0_2 = arith.constant 0 : index
    %c0_3 = arith.constant 0 : index
    %c0_4 = arith.constant 0 : index
    %3 = vector.load %arg7[%c0_2, %c0_3, %c0_4] : memref<1x1x256xf32, #tpu.memory_space<vmem>>, vector<1x1x256xf32>
    %4 = vector.shape_cast %3 : vector<1x1x256xf32> to vector<1x256xf32>
    %c0_5 = arith.constant 0 : index
    %c0_6 = arith.constant 0 : index
    %5 = vector.load %arg8[%c0_5, %c0_6] : memref<8x1xf32, #tpu.memory_space<vmem>>, vector<8x1xf32>
    %c0_7 = arith.constant 0 : index
    %c0_8 = arith.constant 0 : index
    %c0_9 = arith.constant 0 : index
    %6 = vector.load %arg3[%c0_7, %c0_8, %c0_9] : memref<1x256x8xbf16, #tpu.memory_space<vmem>>, vector<1x256x8xbf16>
    %7 = vector.shape_cast %6 : vector<1x256x8xbf16> to vector<256x8xbf16>
    %cst = arith.constant dense<0.000000e+00> : vector<256x256xf32>
    %8 = tpu.matmul %7, %2, %cst {dimension_numbers = #tpu.dot_dimension_numbers<[1], [0], [0], [1], [0, 0, 1, 1], [], []>} : vector<256x8xbf16>, vector<8x256xbf16>, vector<256x256xf32> -> vector<256x256xf32>
    %cst_10 = arith.constant dense<0xFF800000> : vector<256xf32>
    %9 = vector.multi_reduction <maximumf>, %8, %cst_10 [0] : vector<256x256xf32> to vector<256xf32>
    %10 = vector.shape_cast %9 : vector<256xf32> to vector<1x256xf32>
    %11 = vector.broadcast %10 : vector<1x256xf32> to vector<256x256xf32>
    %12 = arith.subf %8, %11 : vector<256x256xf32>
    %13 = math.exp %12 : vector<256x256xf32>
    %14 = arith.truncf %13 : vector<256x256xf32> to vector<256x256xbf16>
    %c0_11 = arith.constant 0 : index
    %c0_12 = arith.constant 0 : index
    %c0_13 = arith.constant 0 : index
    %15 = vector.load %arg5[%c0_11, %c0_12, %c0_13] : memref<1x9x256xbf16, #tpu.memory_space<vmem>>, vector<1x9x256xbf16>
    %16 = vector.shape_cast %15 : vector<1x9x256xbf16> to vector<9x256xbf16>
    %cst_14 = arith.constant dense<0.000000e+00> : vector<9x256xf32>
    %17 = tpu.matmul %16, %14, %cst_14 {dimension_numbers = #tpu.dot_dimension_numbers<[1], [0], [0], [1], [0, 0, 1, 1], [], []>} : vector<9x256xbf16>, vector<256x256xbf16>, vector<9x256xf32> -> vector<9x256xf32>
    %18 = vector.extract_strided_slice %17 {offsets = [0, 0], sizes = [8, 256], strides = [1, 1]} : vector<9x256xf32> to vector<8x256xf32>
    %19 = vector.extract_strided_slice %17 {offsets = [8, 0], sizes = [1, 256], strides = [1, 1]} : vector<9x256xf32> to vector<1x256xf32>
    %20 = tpu.reciprocal %19 {approx = true} : vector<1x256xf32> -> vector<1x256xf32>
    %21 = arith.mulf %4, %20 : vector<1x256xf32>
    %22 = vector.broadcast %21 : vector<1x256xf32> to vector<8x256xf32>
    %23 = arith.mulf %18, %22 : vector<8x256xf32>
    %24 = vector.broadcast %5 : vector<8x1xf32> to vector<8x256xf32>
    %25 = arith.addf %23, %24 : vector<8x256xf32>
    %cst_15 = arith.constant 1.000000e+00 : f32
    %26 = vector.broadcast %cst_15 : f32 to vector<1x256xf32>
    %27 = arith.subf %26, %4 : vector<1x256xf32>
    %c0_16 = arith.constant 0 : index
    %c0_17 = arith.constant 0 : index
    %28 = vector.load %arg9[%c0_16, %c0_17] : memref<8x1xf32, #tpu.memory_space<vmem>>, vector<8x1xf32>
    %c0_18 = arith.constant 0 : index
    %c0_19 = arith.constant 0 : index
    %c0_20 = arith.constant 0 : index
    %29 = vector.load %arg4[%c0_18, %c0_19, %c0_20] : memref<1x256x8xbf16, #tpu.memory_space<vmem>>, vector<1x256x8xbf16>
    %30 = vector.shape_cast %29 : vector<1x256x8xbf16> to vector<256x8xbf16>
    %cst_21 = arith.constant dense<0.000000e+00> : vector<256x256xf32>
    %31 = tpu.matmul %30, %2, %cst_21 {dimension_numbers = #tpu.dot_dimension_numbers<[1], [0], [0], [1], [0, 0, 1, 1], [], []>} : vector<256x8xbf16>, vector<8x256xbf16>, vector<256x256xf32> -> vector<256x256xf32>
    %cst_22 = arith.constant dense<0xFF800000> : vector<256xf32>
    %32 = vector.multi_reduction <maximumf>, %31, %cst_22 [0] : vector<256x256xf32> to vector<256xf32>
    %33 = vector.shape_cast %32 : vector<256xf32> to vector<1x256xf32>
    %34 = vector.broadcast %33 : vector<1x256xf32> to vector<256x256xf32>
    %35 = arith.subf %31, %34 : vector<256x256xf32>
    %36 = math.exp %35 : vector<256x256xf32>
    %37 = arith.truncf %36 : vector<256x256xf32> to vector<256x256xbf16>
    %c0_23 = arith.constant 0 : index
    %c0_24 = arith.constant 0 : index
    %c0_25 = arith.constant 0 : index
    %38 = vector.load %arg6[%c0_23, %c0_24, %c0_25] : memref<1x9x256xbf16, #tpu.memory_space<vmem>>, vector<1x9x256xbf16>
    %39 = vector.shape_cast %38 : vector<1x9x256xbf16> to vector<9x256xbf16>
    %cst_26 = arith.constant dense<0.000000e+00> : vector<9x256xf32>
    %40 = tpu.matmul %39, %37, %cst_26 {dimension_numbers = #tpu.dot_dimension_numbers<[1], [0], [0], [1], [0, 0, 1, 1], [], []>} : vector<9x256xbf16>, vector<256x256xbf16>, vector<9x256xf32> -> vector<9x256xf32>
    %41 = vector.extract_strided_slice %40 {offsets = [0, 0], sizes = [8, 256], strides = [1, 1]} : vector<9x256xf32> to vector<8x256xf32>
    %42 = vector.extract_strided_slice %40 {offsets = [8, 0], sizes = [1, 256], strides = [1, 1]} : vector<9x256xf32> to vector<1x256xf32>
    %43 = tpu.reciprocal %42 {approx = true} : vector<1x256xf32> -> vector<1x256xf32>
    %44 = arith.mulf %27, %43 : vector<1x256xf32>
    %45 = vector.broadcast %44 : vector<1x256xf32> to vector<8x256xf32>
    %46 = arith.mulf %41, %45 : vector<8x256xf32>
    %47 = vector.broadcast %28 : vector<8x1xf32> to vector<8x256xf32>
    %48 = arith.addf %46, %47 : vector<8x256xf32>
    %49 = arith.addf %25, %1 : vector<8x256xf32>
    %50 = arith.addf %49, %48 : vector<8x256xf32>
    %c0_27 = arith.constant 0 : index
    %c0_28 = arith.constant 0 : index
    %c0_29 = arith.constant 0 : index
    %51 = vector.load %arg10[%c0_27, %c0_28, %c0_29] : memref<1x8x256xf32, #tpu.memory_space<vmem>>, vector<1x8x256xf32>
    %52 = vector.shape_cast %51 : vector<1x8x256xf32> to vector<8x256xf32>
    %53 = vector.shape_cast %50 : vector<8x256xf32> to vector<1x8x256xf32>
    tpu.vector_store %arg10[%c0_27, %c0_28, %c0_29], %53 {strides = array<i32>} : memref<1x8x256xf32, #tpu.memory_space<vmem>>, vector<1x8x256xf32>,
    return
  }
  func.func @transform_0(%arg0: i32, %arg1: i32) -> (i32, i32, i32) {
    %c0_i32 = arith.constant 0 : i32
    %c0_i32_0 = arith.constant 0 : i32
    return %arg0, %c0_i32, %arg1 : i32, i32, i32
  }
  func.func @transform_1(%arg0: i32, %arg1: i32) -> (i32, i32, i32) {
    %c0_i32 = arith.constant 0 : i32
    %c0_i32_0 = arith.constant 0 : i32
    %c0_i32_1 = arith.constant 0 : i32
    return %arg0, %c0_i32, %c0_i32_0 : i32, i32, i32
  }
  func.func @transform_2(%arg0: i32, %arg1: i32) -> (i32, i32, i32) {
    %c0_i32 = arith.constant 0 : i32
    %c0_i32_0 = arith.constant 0 : i32
    %c0_i32_1 = arith.constant 0 : i32
    return %arg0, %c0_i32, %c0_i32_0 : i32, i32, i32
  }
  func.func @transform_3(%arg0: i32, %arg1: i32) -> (i32, i32, i32) {
    %c0_i32 = arith.constant 0 : i32
    %c0_i32_0 = arith.constant 0 : i32
    %c0_i32_1 = arith.constant 0 : i32
    return %arg0, %c0_i32, %c0_i32_0 : i32, i32, i32
  }
  func.func @transform_4(%arg0: i32, %arg1: i32) -> (i32, i32, i32) {
    %c0_i32 = arith.constant 0 : i32
    %c0_i32_0 = arith.constant 0 : i32
    %c0_i32_1 = arith.constant 0 : i32
    return %arg0, %c0_i32, %c0_i32_0 : i32, i32, i32
  }
  func.func @transform_5(%arg0: i32, %arg1: i32) -> (i32, i32, i32) {
    %c0_i32 = arith.constant 0 : i32
    %c0_i32_0 = arith.constant 0 : i32
    return %arg0, %c0_i32, %arg1 : i32, i32, i32
  }
  func.func @transform_6(%arg0: i32, %arg1: i32) -> (i32, i32) {
    %c0_i32 = arith.constant 0 : i32
    %c0_i32_0 = arith.constant 0 : i32
    %c0_i32_1 = arith.constant 0 : i32
    return %c0_i32, %c0_i32_0 : i32, i32
  }
  func.func @transform_7(%arg0: i32, %arg1: i32) -> (i32, i32) {
    %c0_i32 = arith.constant 0 : i32
    %c0_i32_0 = arith.constant 0 : i32
    %c0_i32_1 = arith.constant 0 : i32
    return %c0_i32, %c0_i32_0 : i32, i32
  }
  func.func @transform_8(%arg0: i32, %arg1: i32) -> (i32, i32, i32) {
    %c0_i32 = arith.constant 0 : i32
    %c0_i32_0 = arith.constant 0 : i32
    return %arg0, %c0_i32, %arg1 : i32, i32, i32
  }
}

</mosaic_0001>

<llo_original>
// kernel: tpu_custom_call.1
$region0: #{tpu_custom_call.1}
  #allocation0 [shape = 'u32[]', space=smem, size = 0x4, offset = 0x4, fixed_abs, tag = 'smem constant byte address 0x4 - core index']
  #allocation1 [shape = 'u32[144,128]{1,0:T(1,128)}', space=vmem, size = 0x12000, scoped, tag = 'internal scratch']
  %s0 = inlined_call_operand.vmem [shape: f32[2,8,256], index: 0, kind: input, shape index: {}]
  %s1 = inlined_call_operand.vmem [shape: bf16[2,256,8], index: 1, kind: input, shape index: {}]
  %s2 = inlined_call_operand.vmem [shape: bf16[2,256,8], index: 2, kind: input, shape index: {}]
  %s3 = inlined_call_operand.vmem [shape: bf16[2,9,256], index: 3, kind: input, shape index: {}]
  %s4 = inlined_call_operand.vmem [shape: bf16[2,9,256], index: 4, kind: input, shape index: {}]
  %s5 = inlined_call_operand.vmem [shape: f32[2,1,256], index: 5, kind: input, shape index: {}]
  %s6 = inlined_call_operand.vmem [shape: f32[8,1], index: 6, kind: input, shape index: {}]
  %s7 = inlined_call_operand.vmem [shape: f32[8,1], index: 7, kind: input, shape index: {}]
  %s8 = inlined_call_operand.hbm [shape: f32[2,8,256], index: 8, kind: output, shape index: {}]
  %s9 = sld [smem:[#allocation0]]
  $region65: #{tpu_custom_call.1} parent=0
    _
  %s11 = ssub.s32 1, %s9
  %s12 = scalar_select 0, %s11, %s9
  $region1: #{tpu_custom_call.1} parent=0
    #allocation2 [shape = 'u8[16384]{0}', space=vmem, size = 0x4000, scoped, tag = 'output window, operand 0']
    #allocation3 [shape = 's32[2]{0}', space=sflag, size = 0x8, scoped, tag = 'scoped memory for tpu_custom_call.1']
    %13 = vsyncpa [#allocation3], 0
    %s14 = scalar_lea.sflag [#allocation3], 1
    %15 = vsyncpa %s14, 0
    loop: start=0, step=1, limit=4
    $region2: #{tpu_custom_call.1} parent=1 // loop_pre_header
      _
    $region3: #{tpu_custom_call.1} parent=1 // loop_header
      %s17 = sphi 0, %s21
      %p18 = scmp.ge.s32.totalorder %s17, 4
      %s24 = sphi 0, %s36
      %s25 = sphi 0, %s32
      %s26 = sphi 0, %s24
      %s27 = sphi 0, %s25
      %s28 = sphi 0, %s26
      %s29 = sphi 0, %s27
      %s41 = sphi 0, %s43
      %s44 = sphi 0, %s41
      %s45 = sphi 0, %s44
      %s61 = sphi 0, %s45
      %s67 = sphi 0, %s69
      %s70 = sphi 0, %s67
      %s71 = sphi 0, %s70
      %s87 = sphi 0, %s71
      %s93 = sphi 0, %s95
      %s96 = sphi 0, %s93
      %s97 = sphi 0, %s96
      %s113 = sphi 0, %s97
      %s119 = sphi 0, %s121
      %s122 = sphi 0, %s119
      %s123 = sphi 0, %s122
      %s139 = sphi 0, %s123
      %s145 = sphi 0, %s147
      %s148 = sphi 0, %s145
      %s149 = sphi 0, %s148
      %s165 = sphi 0, %s149
      %s173 = sphi 0, %s175
      %s176 = sphi 0, %s173
      %s177 = sphi 0, %s176
      %s193 = sphi 0, %s177
      %s197 = sphi 0, %s197
      %s199 = sphi 0, %s197
      %s200 = sphi 0, %s199
      %s214 = sphi 0, %s200
      %s218 = sphi 0, %s218
      %s220 = sphi 0, %s218
      %s221 = sphi 0, %s220
      %s235 = sphi 0, %s221
      %s243 = sphi 0, %s245
      %s246 = sphi 0, %s243
      %s247 = sphi 0, %s246
      %s263 = sphi 0, %s247
    $region4: #{tpu_custom_call.1} parent=1 // loop_header_branch
      %20 = sbr.rel (%p18) target = $region8
    $region5: #{tpu_custom_call.1} parent=1 // loop_body
      %s22 = ssub.s32 %s17, 1
      %s23 = ssub.s32 %s17, 2
      %s30 = sadd.s32 1, %s25
      %p31 = scmp.ge.s32.totalorder %s30, 1
      %s32 = scalar_select %p31, 0, %s30
      %s33 = sadd.s32 1, %s24
      %s34 = scalar_select %p31, %s33, %s24
      %p35 = scmp.ge.s32.totalorder %s34, 2
      %s36 = scalar_select %p35, 0, %s34
      %s37 = ssub.s32 %s24, %s36
      %s38 = ssub.s32 %s25, %s32
      %s39 = sor.u32 %s37, %s38
      %p40 = scmp.eq.s32.totalorder %s39, 0
      %s42 = sadd.s32 %s41, 1
      %s43 = scalar_select %p40, %s41, %s42
      %p46 = pneg %p40
      %p47 = scmp.eq.s32.totalorder %s17, 1
      %p48 = por %p46, %p47
      %p49 = scmp.ne.s32.totalorder %s41, %s44
      %p50 = scmp.eq.s32.totalorder %s17, 0
      %p51 = por %p49, %p50
      %p52 = scmp.ne.s32.totalorder %s41, %s44
      %p53 = scmp.eq.s32.totalorder %s22, 1
      %p54 = por %p52, %p53
      %p55 = scmp.ne.s32.totalorder %s44, %s45
      %p56 = scmp.eq.s32.totalorder %s22, 0
      %p57 = por %p55, %p56
      %p58 = scmp.ne.s32.totalorder %s44, %s45
      %p59 = scmp.eq.s32.totalorder %s23, 1
      %p60 = por %p58, %p59
      %p62 = scmp.ne.s32.totalorder %s45, %s61
      %p63 = scmp.eq.s32.totalorder %s23, 0
      %p64 = por %p62, %p63
      %s65 = ssub.s32 %s24, %s36
      %p66 = scmp.eq.s32.totalorder %s65, 0
      %s68 = sadd.s32 %s67, 1
      %s69 = scalar_select %p66, %s67, %s68
      %p72 = pneg %p66
      %p73 = scmp.eq.s32.totalorder %s17, 1
      %p74 = por %p72, %p73
      %p75 = scmp.ne.s32.totalorder %s67, %s70
      %p76 = scmp.eq.s32.totalorder %s17, 0
      %p77 = por %p75, %p76
      %p78 = scmp.ne.s32.totalorder %s67, %s70
      %p79 = scmp.eq.s32.totalorder %s22, 1
      %p80 = por %p78, %p79
      %p81 = scmp.ne.s32.totalorder %s70, %s71
      %p82 = scmp.eq.s32.totalorder %s22, 0
      %p83 = por %p81, %p82
      %p84 = scmp.ne.s32.totalorder %s70, %s71
      %p85 = scmp.eq.s32.totalorder %s23, 1
      %p86 = por %p84, %p85
      %p88 = scmp.ne.s32.totalorder %s71, %s87
      %p89 = scmp.eq.s32.totalorder %s23, 0
      %p90 = por %p88, %p89
      %s91 = ssub.s32 %s24, %s36
      %p92 = scmp.eq.s32.totalorder %s91, 0
      %s94 = sadd.s32 %s93, 1
      %s95 = scalar_select %p92, %s93, %s94
      %p98 = pneg %p92
      %p99 = scmp.eq.s32.totalorder %s17, 1
      %p100 = por %p98, %p99
      %p101 = scmp.ne.s32.totalorder %s93, %s96
      %p102 = scmp.eq.s32.totalorder %s17, 0
      %p103 = por %p101, %p102
      %p104 = scmp.ne.s32.totalorder %s93, %s96
      %p105 = scmp.eq.s32.totalorder %s22, 1
      %p106 = por %p104, %p105
      %p107 = scmp.ne.s32.totalorder %s96, %s97
      %p108 = scmp.eq.s32.totalorder %s22, 0
      %p109 = por %p107, %p108
      %p110 = scmp.ne.s32.totalorder %s96, %s97
      %p111 = scmp.eq.s32.totalorder %s23, 1
      %p112 = por %p110, %p111
      %p114 = scmp.ne.s32.totalorder %s97, %s113
      %p115 = scmp.eq.s32.totalorder %s23, 0
      %p116 = por %p114, %p115
      %s117 = ssub.s32 %s24, %s36
      %p118 = scmp.eq.s32.totalorder %s117, 0
      %s120 = sadd.s32 %s119, 1
      %s121 = scalar_select %p118, %s119, %s120
      %p124 = pneg %p118
      %p125 = scmp.eq.s32.totalorder %s17, 1
      %p126 = por %p124, %p125
      %p127 = scmp.ne.s32.totalorder %s119, %s122
      %p128 = scmp.eq.s32.totalorder %s17, 0
      %p129 = por %p127, %p128
      %p130 = scmp.ne.s32.totalorder %s119, %s122
      %p131 = scmp.eq.s32.totalorder %s22, 1
      %p132 = por %p130, %p131
      %p133 = scmp.ne.s32.totalorder %s122, %s123
      %p134 = scmp.eq.s32.totalorder %s22, 0
      %p135 = por %p133, %p134
      %p136 = scmp.ne.s32.totalorder %s122, %s123
      %p137 = scmp.eq.s32.totalorder %s23, 1
      %p138 = por %p136, %p137
      %p140 = scmp.ne.s32.totalorder %s123, %s139
      %p141 = scmp.eq.s32.totalorder %s23, 0
      %p142 = por %p140, %p141
      %s143 = ssub.s32 %s24, %s36
      %p144 = scmp.eq.s32.totalorder %s143, 0
      %s146 = sadd.s32 %s145, 1
      %s147 = scalar_select %p144, %s145, %s146
      %p150 = pneg %p144
      %p151 = scmp.eq.s32.totalorder %s17, 1
      %p152 = por %p150, %p151
      %p153 = scmp.ne.s32.totalorder %s145, %s148
      %p154 = scmp.eq.s32.totalorder %s17, 0
      %p155 = por %p153, %p154
      %p156 = scmp.ne.s32.totalorder %s145, %s148
      %p157 = scmp.eq.s32.totalorder %s22, 1
      %p158 = por %p156, %p157
      %p159 = scmp.ne.s32.totalorder %s148, %s149
      %p160 = scmp.eq.s32.totalorder %s22, 0
      %p161 = por %p159, %p160
      %p162 = scmp.ne.s32.totalorder %s148, %s149
      %p163 = scmp.eq.s32.totalorder %s23, 1
      %p164 = por %p162, %p163
      %p166 = scmp.ne.s32.totalorder %s149, %s165
      %p167 = scmp.eq.s32.totalorder %s23, 0
      %p168 = por %p166, %p167
      %s169 = ssub.s32 %s24, %s36
      %s170 = ssub.s32 %s25, %s32
      %s171 = sor.u32 %s169, %s170
      %p172 = scmp.eq.s32.totalorder %s171, 0
      %s174 = sadd.s32 %s173, 1
      %s175 = scalar_select %p172, %s173, %s174
      %p178 = pneg %p172
      %p179 = scmp.eq.s32.totalorder %s17, 1
      %p180 = por %p178, %p179
      %p181 = scmp.ne.s32.totalorder %s173, %s176
      %p182 = scmp.eq.s32.totalorder %s17, 0
      %p183 = por %p181, %p182
      %p184 = scmp.ne.s32.totalorder %s173, %s176
      %p185 = scmp.eq.s32.totalorder %s22, 1
      %p186 = por %p184, %p185
      %p187 = scmp.ne.s32.totalorder %s176, %s177
      %p188 = scmp.eq.s32.totalorder %s22, 0
      %p189 = por %p187, %p188
      %p190 = scmp.ne.s32.totalorder %s176, %s177
      %p191 = scmp.eq.s32.totalorder %s23, 1
      %p192 = por %p190, %p191
      %p194 = scmp.ne.s32.totalorder %s177, %s193
      %p195 = scmp.eq.s32.totalorder %s23, 0
      %p196 = por %p194, %p195
      %s198 = sadd.s32 %s197, 1
      %p201 = scmp.eq.s32.totalorder %s17, 1
      %p202 = scmp.ne.s32.totalorder %s197, %s199
      %p203 = scmp.eq.s32.totalorder %s17, 0
      %p204 = por %p202, %p203
      %p205 = scmp.ne.s32.totalorder %s197, %s199
      %p206 = scmp.eq.s32.totalorder %s22, 1
      %p207 = por %p205, %p206
      %p208 = scmp.ne.s32.totalorder %s199, %s200
      %p209 = scmp.eq.s32.totalorder %s22, 0
      %p210 = por %p208, %p209
      %p211 = scmp.ne.s32.totalorder %s199, %s200
      %p212 = scmp.eq.s32.totalorder %s23, 1
      %p213 = por %p211, %p212
      %p215 = scmp.ne.s32.totalorder %s200, %s214
      %p216 = scmp.eq.s32.totalorder %s23, 0
      %p217 = por %p215, %p216
      %s219 = sadd.s32 %s218, 1
      %p222 = scmp.eq.s32.totalorder %s17, 1
      %p223 = scmp.ne.s32.totalorder %s218, %s220
      %p224 = scmp.eq.s32.totalorder %s17, 0
      %p225 = por %p223, %p224
      %p226 = scmp.ne.s32.totalorder %s218, %s220
      %p227 = scmp.eq.s32.totalorder %s22, 1
      %p228 = por %p226, %p227
      %p229 = scmp.ne.s32.totalorder %s220, %s221
      %p230 = scmp.eq.s32.totalorder %s22, 0
      %p231 = por %p229, %p230
      %p232 = scmp.ne.s32.totalorder %s220, %s221
      %p233 = scmp.eq.s32.totalorder %s23, 1
      %p234 = por %p232, %p233
      %p236 = scmp.ne.s32.totalorder %s221, %s235
      %p237 = scmp.eq.s32.totalorder %s23, 0
      %p238 = por %p236, %p237
      %s239 = ssub.s32 %s24, %s36
      %s240 = ssub.s32 %s25, %s32
      %s241 = sor.u32 %s239, %s240
      %p242 = scmp.eq.s32.totalorder %s241, 0
      %s244 = sadd.s32 %s243, 1
      %s245 = scalar_select %p242, %s243, %s244
      %p248 = pneg %p242
      %p249 = scmp.eq.s32.totalorder %s17, 1
      %p250 = por %p248, %p249
      %p251 = scmp.ne.s32.totalorder %s243, %s246
      %p252 = scmp.eq.s32.totalorder %s17, 0
      %p253 = por %p251, %p252
      %p254 = scmp.ne.s32.totalorder %s243, %s246
      %p255 = scmp.eq.s32.totalorder %s22, 1
      %p256 = por %p254, %p255
      %p257 = scmp.ne.s32.totalorder %s246, %s247
      %p258 = scmp.eq.s32.totalorder %s22, 0
      %p259 = por %p257, %p258
      %p260 = scmp.ne.s32.totalorder %s246, %s247
      %p261 = scmp.eq.s32.totalorder %s23, 1
      %p262 = por %p260, %p261
      %p264 = scmp.ne.s32.totalorder %s247, %s263
      %p265 = scmp.eq.s32.totalorder %s23, 0
      %p266 = por %p264, %p265
      %p267 = scmp.le.s32.totalorder 1, %s17
      %p268 = scmp.lt.s32.totalorder %s17, 3
      %p269 = pnand %p267, %p268
      %p270 = pneg %p269
      // Predicated region
      $region9: #{tpu_custom_call.1} parent=5 // pred_check
        _
      $region10: #{tpu_custom_call.1} parent=5 // pred_check_branch
        %272 = sbr.rel (%p269) target = $region12
      $region11: #{tpu_custom_call.1} parent=5 // pred_region
        %s273 = ssub.s32 %s17, 1
        // Predicated region
        $region13: #{tpu_custom_call.1} parent=11 // pred_check
          %p274 = pneg %p210
        $region14: #{tpu_custom_call.1} parent=11 // pred_check_branch
          %276 = sbr.rel (%p274) target = $region16
        $region15: #{tpu_custom_call.1} parent=11 // pred_region
          _
        $region16: #{tpu_custom_call.1} parent=11 // pred_fallthru
          _
        // Predicated region
        $region17: #{tpu_custom_call.1} parent=11 // pred_check
          %p277 = pneg %p231
        $region18: #{tpu_custom_call.1} parent=11 // pred_check_branch
          %279 = sbr.rel (%p277) target = $region20
        $region19: #{tpu_custom_call.1} parent=11 // pred_region
          _
        $region20: #{tpu_custom_call.1} parent=11 // pred_fallthru
          _
      $region12: #{tpu_custom_call.1} parent=5 // pred_fallthru
        _
      %p280 = scmp.lt.s32.totalorder %s17, 2
      // Predicated region
      $region21: #{tpu_custom_call.1} parent=5 // pred_check
        %p281 = pneg %p280
      $region22: #{tpu_custom_call.1} parent=5 // pred_check_branch
        %283 = sbr.rel (%p281) target = $region24
      $region23: #{tpu_custom_call.1} parent=5 // pred_region
        // Predicated region
        $region25: #{tpu_custom_call.1} parent=23 // pred_check
          %p284 = pneg %p51
        $region26: #{tpu_custom_call.1} parent=23 // pred_check_branch
          %286 = sbr.rel (%p284) target = $region28
        $region27: #{tpu_custom_call.1} parent=23 // pred_region
          %s287 = smul.u32 2, %s25
          %p288 = scmp.lt.s32.totalorder %s24, 1
          %s289 = scalar_select %p288, %s24, 1
          %p290 = scmp.lt.s32.totalorder %s287, 1
          %s291 = scalar_select %p290, %s287, 1
          %s292 = smul.addr %s289, 2
          %s293 = sadd.s32 %s291, %s292
          %s294 = smul.addr %s293, 8
          %s295 = scalar_lea.vmem %s0, %s294
          %s296 = smul.u32 2, %s25
        $region28: #{tpu_custom_call.1} parent=23 // pred_fallthru
          _
        // Predicated region
        $region29: #{tpu_custom_call.1} parent=23 // pred_check
          %p297 = pneg %p77
        $region30: #{tpu_custom_call.1} parent=23 // pred_check_branch
          %299 = sbr.rel (%p297) target = $region32
        $region31: #{tpu_custom_call.1} parent=23 // pred_region
          %p300 = scmp.lt.s32.totalorder %s24, 1
          %s301 = scalar_select %p300, %s24, 1
          %s302 = smul.addr %s301, 32
          %s303 = smul.addr %s302, 4
          %s304 = scalar_lea.vmem %s1, %s303
        $region32: #{tpu_custom_call.1} parent=23 // pred_fallthru
          _
        // Predicated region
        $region33: #{tpu_custom_call.1} parent=23 // pred_check
          %p305 = pneg %p103
        $region34: #{tpu_custom_call.1} parent=23 // pred_check_branch
          %307 = sbr.rel (%p305) target = $region36
        $region35: #{tpu_custom_call.1} parent=23 // pred_region
          %p308 = scmp.lt.s32.totalorder %s24, 1
          %s309 = scalar_select %p308, %s24, 1
          %s310 = smul.addr %s309, 32
          %s311 = smul.addr %s310, 4
          %s312 = scalar_lea.vmem %s2, %s311
        $region36: #{tpu_custom_call.1} parent=23 // pred_fallthru
          _
        // Predicated region
        $region37: #{tpu_custom_call.1} parent=23 // pred_check
          %p313 = pneg %p129
        $region38: #{tpu_custom_call.1} parent=23 // pred_check_branch
          %315 = sbr.rel (%p313) target = $region40
        $region39: #{tpu_custom_call.1} parent=23 // pred_region
          %p316 = scmp.lt.s32.totalorder %s24, 1
          %s317 = scalar_select %p316, %s24, 1
          %s318 = smul.addr %s317, 4
          %s319 = smul.addr %s318, 4
          %s320 = scalar_lea.vmem %s3, %s319
        $region40: #{tpu_custom_call.1} parent=23 // pred_fallthru
          _
        // Predicated region
        $region41: #{tpu_custom_call.1} parent=23 // pred_check
          %p321 = pneg %p155
        $region42: #{tpu_custom_call.1} parent=23 // pred_check_branch
          %323 = sbr.rel (%p321) target = $region44
        $region43: #{tpu_custom_call.1} parent=23 // pred_region
          %p324 = scmp.lt.s32.totalorder %s24, 1
          %s325 = scalar_select %p324, %s24, 1
          %s326 = smul.addr %s325, 4
          %s327 = smul.addr %s326, 4
          %s328 = scalar_lea.vmem %s4, %s327
        $region44: #{tpu_custom_call.1} parent=23 // pred_fallthru
          _
        // Predicated region
        $region45: #{tpu_custom_call.1} parent=23 // pred_check
          %p329 = pneg %p183
        $region46: #{tpu_custom_call.1} parent=23 // pred_check_branch
          %331 = sbr.rel (%p329) target = $region48
        $region47: #{tpu_custom_call.1} parent=23 // pred_region
          %s332 = smul.u32 2, %s25
          %p333 = scmp.lt.s32.totalorder %s24, 1
          %s334 = scalar_select %p333, %s24, 1
          %p335 = scmp.lt.s32.totalorder %s332, 1
          %s336 = scalar_select %p335, %s332, 1
          %s337 = smul.addr %s334, 2
          %s338 = sadd.s32 %s336, %s337
          %s339 = scalar_lea.vmem %s5, %s338
          %s340 = smul.u32 2, %s25
        $region48: #{tpu_custom_call.1} parent=23 // pred_fallthru
          _
      $region24: #{tpu_custom_call.1} parent=5 // pred_fallthru
        _
      %p341 = scmp.le.s32.totalorder 1, %s17
      %p342 = scmp.lt.s32.totalorder %s17, 3
      %p343 = pnand %p341, %p342
      %p344 = pneg %p343
      // Predicated region
      $region49: #{tpu_custom_call.1} parent=5 // pred_check
        _
      $region50: #{tpu_custom_call.1} parent=5 // pred_check_branch
        %346 = sbr.rel (%p343) target = $region52
      $region51: #{tpu_custom_call.1} parent=5 // pred_region
        %s347 = ssub.s32 %s17, 1
        %s348 = smul.u32 2, %s27
        %p349 = scmp.lt.s32.totalorder %s26, 1
        %s350 = scalar_select %p349, %s26, 1
        %p351 = scmp.lt.s32.totalorder %s348, 1
        %s352 = scalar_select %p351, %s348, 1
        %s353 = smul.addr %s350, 2
        %s354 = sadd.s32 %s352, %s353
        %s355 = smul.addr %s354, 8
        %s356 = scalar_lea.vmem %s0, %s355
        %p357 = pneg %p57
        %p358 = pneg %p54
        %p359 = scmp.lt.s32.totalorder %s26, 1
        %s360 = scalar_select %p359, %s26, 1
        %s361 = smul.addr %s360, 32
        %s362 = smul.addr %s361, 4
        %s363 = scalar_lea.vmem %s1, %s362
        %p364 = pneg %p83
        %p365 = pneg %p80
        %p366 = scmp.lt.s32.totalorder %s26, 1
        %s367 = scalar_select %p366, %s26, 1
        %s368 = smul.addr %s367, 32
        %s369 = smul.addr %s368, 4
        %s370 = scalar_lea.vmem %s2, %s369
        %p371 = pneg %p109
        %p372 = pneg %p106
        %p373 = scmp.lt.s32.totalorder %s26, 1
        %s374 = scalar_select %p373, %s26, 1
        %s375 = smul.addr %s374, 4
        %s376 = smul.addr %s375, 4
        %s377 = scalar_lea.vmem %s3, %s376
        %p378 = pneg %p135
        %p379 = pneg %p132
        %p380 = scmp.lt.s32.totalorder %s26, 1
        %s381 = scalar_select %p380, %s26, 1
        %s382 = smul.addr %s381, 4
        %s383 = smul.addr %s382, 4
        %s384 = scalar_lea.vmem %s4, %s383
        %p385 = pneg %p161
        %p386 = pneg %p158
        %s387 = smul.u32 2, %s27
        %p388 = scmp.lt.s32.totalorder %s26, 1
        %s389 = scalar_select %p388, %s26, 1
        %p390 = scmp.lt.s32.totalorder %s387, 1
        %s391 = scalar_select %p390, %s387, 1
        %s392 = smul.addr %s389, 2
        %s393 = sadd.s32 %s391, %s392
        %s394 = scalar_lea.vmem %s5, %s393
        %p395 = pneg %p189
        %p396 = pneg %p186
        %p397 = pneg %p210
        %p398 = pneg %p207
        %p399 = pneg %p231
        %p400 = pneg %p228
        %p401 = pneg %p259
        %p402 = pneg %p256
        %s403 = sand.u32 %s246, 1
        %s404 = scalar_lea.sflag [#allocation3], %s403
        %s405 = sand.u32 %s246, 1
        %s406 = smul.addr %s405, 16
        %s407 = scalar_lea.vmem [#allocation2], %s406
        %s408 = smul.u32 2, %s27
        %p409 = scmp.lt.s32.totalorder %s26, 1
        %s410 = scalar_select %p409, %s26, 1
        %p411 = scmp.lt.s32.totalorder %s408, 1
        %s412 = scalar_select %p411, %s408, 1
        %s413 = smul.addr %s410, 2
        %s414 = sadd.s32 %s412, %s413
        %s415 = smul.addr %s414, 8
        %s416 = scalar_lea.vmem %s0, %s415
        %s417 = smul.u32 2, %s27
        %p418 = scmp.lt.s32.totalorder %s26, 1
        %s419 = scalar_select %p418, %s26, 1
        %s420 = smul.addr %s419, 32
        %s421 = smul.addr %s420, 4
        %s422 = scalar_lea.vmem %s1, %s421
        %p423 = scmp.lt.s32.totalorder %s26, 1
        %s424 = scalar_select %p423, %s26, 1
        %s425 = smul.addr %s424, 32
        %s426 = smul.addr %s425, 4
        %s427 = scalar_lea.vmem %s2, %s426
        %p428 = scmp.lt.s32.totalorder %s26, 1
        %s429 = scalar_select %p428, %s26, 1
        %s430 = smul.addr %s429, 4
        %s431 = smul.addr %s430, 4
        %s432 = scalar_lea.vmem %s3, %s431
        %p433 = scmp.lt.s32.totalorder %s26, 1
        %s434 = scalar_select %p433, %s26, 1
        %s435 = smul.addr %s434, 4
        %s436 = smul.addr %s435, 4
        %s437 = scalar_lea.vmem %s4, %s436
        %s438 = smul.u32 2, %s27
        %p439 = scmp.lt.s32.totalorder %s26, 1
        %s440 = scalar_select %p439, %s26, 1
        %p441 = scmp.lt.s32.totalorder %s438, 1
        %s442 = scalar_select %p441, %s438, 1
        %s443 = smul.addr %s440, 2
        %s444 = sadd.s32 %s442, %s443
        %s445 = scalar_lea.vmem %s5, %s444
        %s446 = smul.u32 2, %s27
        %s447 = smul.u32 2, %s27
        %v449 = vld [vmem:[%s416] sm:$0xff]
        %v450 = vld [vmem:[%s416 + $0x8] sm:$0xff]
        %v451 = vpack.c.bf16 %v449, %v449
        %v452 = vpack.c.bf16 %v450, %v450
        %v453 = vld [vmem:[%s445] sm:$0x3]
        %v454 = vld [vmem:[%s6] sm:$0xff]
        %v455 = vld [vmem:[%s422] sm:$0xf]
        %v456 = vld [vmem:[%s422 + $0x4] sm:$0xf]
        %v457 = vld [vmem:[%s422 + $0x8] sm:$0xf]
        %v458 = vld [vmem:[%s422 + $0xc] sm:$0xf]
        %v459 = vld [vmem:[%s422 + $0x10] sm:$0xf]
        %v460 = vld [vmem:[%s422 + $0x14] sm:$0xf]
        %v461 = vld [vmem:[%s422 + $0x18] sm:$0xf]
        %v462 = vld [vmem:[%s422 + $0x1c] sm:$0xf]
        %v463 = vld [vmem:[%s422 + $0x20] sm:$0xf]
        %v464 = vld [vmem:[%s422 + $0x24] sm:$0xf]
        %v465 = vld [vmem:[%s422 + $0x28] sm:$0xf]
        %v466 = vld [vmem:[%s422 + $0x2c] sm:$0xf]
        %v467 = vld [vmem:[%s422 + $0x30] sm:$0xf]
        %v468 = vld [vmem:[%s422 + $0x34] sm:$0xf]
        %v469 = vld [vmem:[%s422 + $0x38] sm:$0xf]
        %v470 = vld [vmem:[%s422 + $0x3c] sm:$0xf]
        %v471 = vld [vmem:[%s422 + $0x40] sm:$0xf]
        %v472 = vld [vmem:[%s422 + $0x44] sm:$0xf]
        %v473 = vld [vmem:[%s422 + $0x48] sm:$0xf]
        %v474 = vld [vmem:[%s422 + $0x4c] sm:$0xf]
        %v475 = vld [vmem:[%s422 + $0x50] sm:$0xf]
        %v476 = vld [vmem:[%s422 + $0x54] sm:$0xf]
        %v477 = vld [vmem:[%s422 + $0x58] sm:$0xf]
        %v478 = vld [vmem:[%s422 + $0x5c] sm:$0xf]
        %v479 = vld [vmem:[%s422 + $0x60] sm:$0xf]
        %v480 = vld [vmem:[%s422 + $0x64] sm:$0xf]
        %v481 = vld [vmem:[%s422 + $0x68] sm:$0xf]
        %v482 = vld [vmem:[%s422 + $0x6c] sm:$0xf]
        %v483 = vld [vmem:[%s422 + $0x70] sm:$0xf]
        %v484 = vld [vmem:[%s422 + $0x74] sm:$0xf]
        %v485 = vld [vmem:[%s422 + $0x78] sm:$0xf]
        %v486 = vld [vmem:[%s422 + $0x7c] sm:$0xf]
        %v519 = vunpack.c.l.b16 %v455
        %v520 = vunpack.c.l.b16 %v456
        %v521 = vunpack.c.l.b16 %v457
        %v522 = vunpack.c.l.b16 %v458
        %v523 = vunpack.c.l.b16 %v459
        %v524 = vunpack.c.l.b16 %v460
        %v525 = vunpack.c.l.b16 %v461
        %v526 = vunpack.c.l.b16 %v462
        %v527 = vunpack.c.l.b16 %v463
        %v528 = vunpack.c.l.b16 %v464
        %v529 = vunpack.c.l.b16 %v465
        %v530 = vunpack.c.l.b16 %v466
        %v531 = vunpack.c.l.b16 %v467
        %v532 = vunpack.c.l.b16 %v468
        %v533 = vunpack.c.l.b16 %v469
        %v534 = vunpack.c.l.b16 %v470
        %v535 = vunpack.c.l.b16 %v471
        %v536 = vunpack.c.l.b16 %v472
        %v537 = vunpack.c.l.b16 %v473
        %v538 = vunpack.c.l.b16 %v474
        %v539 = vunpack.c.l.b16 %v475
        %v540 = vunpack.c.l.b16 %v476
        %v541 = vunpack.c.l.b16 %v477
        %v542 = vunpack.c.l.b16 %v478
        %v543 = vunpack.c.l.b16 %v479
        %v544 = vunpack.c.l.b16 %v480
        %v545 = vunpack.c.l.b16 %v481
        %v546 = vunpack.c.l.b16 %v482
        %v547 = vunpack.c.l.b16 %v483
        %v548 = vunpack.c.l.b16 %v484
        %v549 = vunpack.c.l.b16 %v485
        %v550 = vunpack.c.l.b16 %v486
        %v551 = vpack.c.b16 %v520, %v519
        %v552 = vpack.c.b16 %v522, %v521
        %v553 = vpack.c.b16 %v524, %v523
        %v554 = vpack.c.b16 %v526, %v525
        %v555 = vpack.c.b16 %v528, %v527
        %v556 = vpack.c.b16 %v530, %v529
        %v557 = vpack.c.b16 %v532, %v531
        %v558 = vpack.c.b16 %v534, %v533
        %v559 = vpack.c.b16 %v536, %v535
        %v560 = vpack.c.b16 %v538, %v537
        %v561 = vpack.c.b16 %v540, %v539
        %v562 = vpack.c.b16 %v542, %v541
        %v563 = vpack.c.b16 %v544, %v543
        %v564 = vpack.c.b16 %v546, %v545
        %v565 = vpack.c.b16 %v548, %v547
        %v566 = vpack.c.b16 %v550, %v549
        %vm567 = vcmask 64512
        %v569 = vsel %vm567, %v551, 0
        %v572 = vsel %vm567, %v552, 0
        %v575 = vsel %vm567, %v553, 0
        %v578 = vsel %vm567, %v554, 0
        %v581 = vsel %vm567, %v555, 0
        %v584 = vsel %vm567, %v556, 0
        %v587 = vsel %vm567, %v557, 0
        %v590 = vsel %vm567, %v558, 0
        %v593 = vsel %vm567, %v559, 0
        %v596 = vsel %vm567, %v560, 0
        %v599 = vsel %vm567, %v561, 0
        %v602 = vsel %vm567, %v562, 0
        %v605 = vsel %vm567, %v563, 0
        %v608 = vsel %vm567, %v564, 0
        %v611 = vsel %vm567, %v565, 0
        %v614 = vsel %vm567, %v566, 0
        %vm616 = vcmask 1043456
        %v618 = vsel %vm616, %v451, 0
        %v621 = vsel %vm616, %v452, 0
        %623 = vmatprep.subr.bf16.mxu0 %v621
        %624 = vmatpush1.bf16.msra.mxu0 %v618
        %625 = vmatprep.subr.bf16.mxu0 0
        %626 = vmatpush1.bf16.msra.mxu0 0
        %627 = vmatprep.subr.bf16.mxu0 0
        %628 = vmatpush1.bf16.msra.mxu0 0
        %629 = vmatprep.subr.bf16.mxu0 0
        %630 = vmatpush1.bf16.msra.mxu0 0
        %631 = vmatprep.subr.bf16.mxu0 0
        %632 = vmatpush1.bf16.msra.mxu0 0
        %633 = vmatprep.subr.bf16.mxu0 0
        %634 = vmatpush1.bf16.msra.mxu0 0
        %635 = vmatprep.subr.bf16.mxu0 0
        %636 = vmatpush1.bf16.msra.mxu0 0
        %637 = vmatprep.subr.bf16.mxu0 0
        %638 = vmatpush1.bf16.msra.mxu0 0
        %639 = vmatprep.subr.bf16.mxu0 0
        %640 = vmatpush1.bf16.msra.mxu0 0
        %641 = vmatprep.subr.bf16.mxu0 0
        %642 = vmatpush1.bf16.msra.mxu0 0
        %643 = vmatprep.subr.bf16.mxu0 0
        %644 = vmatpush1.bf16.msra.mxu0 0
        %645 = vmatprep.subr.bf16.mxu0 0
        %646 = vmatpush1.bf16.msra.mxu0 0
        %647 = vmatprep.subr.bf16.mxu0 0
        %648 = vmatpush1.bf16.msra.mxu0 0
        %649 = vmatprep.subr.bf16.mxu0 0
        %650 = vmatpush1.bf16.msra.mxu0 0
        %651 = vmatprep.subr.bf16.mxu0 0
        %652 = vmatpush1.bf16.msra.mxu0 0
        %653 = vmatprep.subr.bf16.mxu0 0
        %654 = vmatpush1.bf16.msra.mxu0 0
        %655 = vmatprep.mubr.bf16.mxu0 0
        %656 = vmatmul.mubr.bf16.gmra.mrb[0].mxu0 %v569
        %v657 = vpop.f32.mrb[0].mxu0
        %v658 = vadd.f32 0.0, %v657
        %v659 = vpop.f32.mrb[0].mxu0
        %v660 = vadd.f32 0.0, %v659
        %v661 = vpop.f32.mrb[0].mxu0
        %v662 = vadd.f32 0.0, %v661
        %v663 = vpop.f32.mrb[0].mxu0
        %v664 = vadd.f32 0.0, %v663
        %665 = vmatprep.mubr.bf16.mxu0 0
        %666 = vmatmul.mubr.bf16.gmra.mrb[0].mxu0 %v572
        %v667 = vpop.f32.mrb[0].mxu0
        %v668 = vadd.f32 0.0, %v667
        %v669 = vpop.f32.mrb[0].mxu0
        %v670 = vadd.f32 0.0, %v669
        %v671 = vpop.f32.mrb[0].mxu0
        %v672 = vadd.f32 0.0, %v671
        %v673 = vpop.f32.mrb[0].mxu0
        %v674 = vadd.f32 0.0, %v673
        %675 = vmatprep.mubr.bf16.mxu0 0
        %676 = vmatmul.mubr.bf16.gmra.mrb[0].mxu0 %v575
        %v677 = vpop.f32.mrb[0].mxu0
        %v678 = vadd.f32 0.0, %v677
        %v679 = vpop.f32.mrb[0].mxu0
        %v680 = vadd.f32 0.0, %v679
        %v681 = vpop.f32.mrb[0].mxu0
        %v682 = vadd.f32 0.0, %v681
        %v683 = vpop.f32.mrb[0].mxu0
        %v684 = vadd.f32 0.0, %v683
        %685 = vmatprep.mubr.bf16.mxu0 0
        %686 = vmatmul.mubr.bf16.gmra.mrb[0].mxu0 %v578
        %v687 = vpop.f32.mrb[0].mxu0
        %v688 = vadd.f32 0.0, %v687
        %v689 = vpop.f32.mrb[0].mxu0
        %v690 = vadd.f32 0.0, %v689
        %v691 = vpop.f32.mrb[0].mxu0
        %v692 = vadd.f32 0.0, %v691
        %v693 = vpop.f32.mrb[0].mxu0
        %v694 = vadd.f32 0.0, %v693
        %695 = vmatprep.mubr.bf16.mxu0 0
        %696 = vmatmul.mubr.bf16.gmra.mrb[0].mxu0 %v581
        %v697 = vpop.f32.mrb[0].mxu0
        %v698 = vadd.f32 0.0, %v697
        %v699 = vpop.f32.mrb[0].mxu0
        %v700 = vadd.f32 0.0, %v699
        %v701 = vpop.f32.mrb[0].mxu0
        %v702 = vadd.f32 0.0, %v701
        %v703 = vpop.f32.mrb[0].mxu0
        %v704 = vadd.f32 0.0, %v703
        %705 = vmatprep.mubr.bf16.mxu0 0
        %706 = vmatmul.mubr.bf16.gmra.mrb[0].mxu0 %v584
        %v707 = vpop.f32.mrb[0].mxu0
        %v708 = vadd.f32 0.0, %v707
        %v709 = vpop.f32.mrb[0].mxu0
        %v710 = vadd.f32 0.0, %v709
        %v711 = vpop.f32.mrb[0].mxu0
        %v712 = vadd.f32 0.0, %v711
        %v713 = vpop.f32.mrb[0].mxu0
        %v714 = vadd.f32 0.0, %v713
        %715 = vmatprep.mubr.bf16.mxu0 0
        %716 = vmatmul.mubr.bf16.gmra.mrb[0].mxu0 %v587
        %v717 = vpop.f32.mrb[0].mxu0
        %v718 = vadd.f32 0.0, %v717
        %v719 = vpop.f32.mrb[0].mxu0
        %v720 = vadd.f32 0.0, %v719
        %v721 = vpop.f32.mrb[0].mxu0
        %v722 = vadd.f32 0.0, %v721
        %v723 = vpop.f32.mrb[0].mxu0
        %v724 = vadd.f32 0.0, %v723
        %725 = vmatprep.mubr.bf16.mxu0 0
        %726 = vmatmul.mubr.bf16.gmra.mrb[0].mxu0 %v590
        %v727 = vpop.f32.mrb[0].mxu0
        %v728 = vadd.f32 0.0, %v727
        %v729 = vpop.f32.mrb[0].mxu0
        %v730 = vadd.f32 0.0, %v729
        %v731 = vpop.f32.mrb[0].mxu0
        %v732 = vadd.f32 0.0, %v731
        %v733 = vpop.f32.mrb[0].mxu0
        %v734 = vadd.f32 0.0, %v733
        %735 = vmatprep.mubr.bf16.mxu0 0
        %736 = vmatmul.mubr.bf16.gmra.mrb[0].mxu0 %v593
        %v737 = vpop.f32.mrb[0].mxu0
        %v738 = vadd.f32 0.0, %v737
        %v739 = vpop.f32.mrb[0].mxu0
        %v740 = vadd.f32 0.0, %v739
        %v741 = vpop.f32.mrb[0].mxu0
        %v742 = vadd.f32 0.0, %v741
        %v743 = vpop.f32.mrb[0].mxu0
        %v744 = vadd.f32 0.0, %v743
        %745 = vmatprep.mubr.bf16.mxu0 0
        %746 = vmatmul.mubr.bf16.gmra.mrb[0].mxu0 %v596
        %v747 = vpop.f32.mrb[0].mxu0
        %v748 = vadd.f32 0.0, %v747
        %v749 = vpop.f32.mrb[0].mxu0
        %v750 = vadd.f32 0.0, %v749
        %v751 = vpop.f32.mrb[0].mxu0
        %v752 = vadd.f32 0.0, %v751
        %v753 = vpop.f32.mrb[0].mxu0
        %v754 = vadd.f32 0.0, %v753
        %755 = vmatprep.mubr.bf16.mxu0 0
        %756 = vmatmul.mubr.bf16.gmra.mrb[0].mxu0 %v599
        %v757 = vpop.f32.mrb[0].mxu0
        %v758 = vadd.f32 0.0, %v757
        %v759 = vpop.f32.mrb[0].mxu0
        %v760 = vadd.f32 0.0, %v759
        %v761 = vpop.f32.mrb[0].mxu0
        %v762 = vadd.f32 0.0, %v761
        %v763 = vpop.f32.mrb[0].mxu0
        %v764 = vadd.f32 0.0, %v763
        %765 = vmatprep.mubr.bf16.mxu0 0
        %766 = vmatmul.mubr.bf16.gmra.mrb[0].mxu0 %v602
        %v767 = vpop.f32.mrb[0].mxu0
        %v768 = vadd.f32 0.0, %v767
        %v769 = vpop.f32.mrb[0].mxu0
        %v770 = vadd.f32 0.0, %v769
        %v771 = vpop.f32.mrb[0].mxu0
        %v772 = vadd.f32 0.0, %v771
        %v773 = vpop.f32.mrb[0].mxu0
        %v774 = vadd.f32 0.0, %v773
        %775 = vmatprep.mubr.bf16.mxu0 0
        %776 = vmatmul.mubr.bf16.gmra.mrb[0].mxu0 %v605
        %v777 = vpop.f32.mrb[0].mxu0
        %v778 = vadd.f32 0.0, %v777
        %v779 = vpop.f32.mrb[0].mxu0
        %v780 = vadd.f32 0.0, %v779
        %v781 = vpop.f32.mrb[0].mxu0
        %v782 = vadd.f32 0.0, %v781
        %v783 = vpop.f32.mrb[0].mxu0
        %v784 = vadd.f32 0.0, %v783
        %785 = vmatprep.mubr.bf16.mxu0 0
        %786 = vmatmul.mubr.bf16.gmra.mrb[0].mxu0 %v608
        %v787 = vpop.f32.mrb[0].mxu0
        %v788 = vadd.f32 0.0, %v787
        %v789 = vpop.f32.mrb[0].mxu0
        %v790 = vadd.f32 0.0, %v789
        %v791 = vpop.f32.mrb[0].mxu0
        %v792 = vadd.f32 0.0, %v791
        %v793 = vpop.f32.mrb[0].mxu0
        %v794 = vadd.f32 0.0, %v793
        %795 = vmatprep.mubr.bf16.mxu0 0
        %796 = vmatmul.mubr.bf16.gmra.mrb[0].mxu0 %v611
        %v797 = vpop.f32.mrb[0].mxu0
        %v798 = vadd.f32 0.0, %v797
        %v799 = vpop.f32.mrb[0].mxu0
        %v800 = vadd.f32 0.0, %v799
        %v801 = vpop.f32.mrb[0].mxu0
        %v802 = vadd.f32 0.0, %v801
        %v803 = vpop.f32.mrb[0].mxu0
        %v804 = vadd.f32 0.0, %v803
        %805 = vmatprep.mubr.bf16.mxu0 0
        %806 = vmatmul.mubr.bf16.gmra.mrb[0].mxu0 %v614
        %v807 = vpop.f32.mrb[0].mxu0
        %v808 = vadd.f32 0.0, %v807
        %v809 = vpop.f32.mrb[0].mxu0
        %v810 = vadd.f32 0.0, %v809
        %v811 = vpop.f32.mrb[0].mxu0
        %v812 = vadd.f32 0.0, %v811
        %v813 = vpop.f32.mrb[0].mxu0
        %v814 = vadd.f32 0.0, %v813
        %815 = vdwg.mxu0
        %v816 = vmax.f32 %v658, %v668
        %v817 = vmax.f32 %v662, %v672
        %v818 = vmax.f32 %v816, %v678
        %v819 = vmax.f32 %v817, %v682
        %v820 = vmax.f32 %v818, %v688
        %v821 = vmax.f32 %v819, %v692
        %v822 = vmax.f32 %v820, %v698
        %v823 = vmax.f32 %v821, %v702
        %v824 = vmax.f32 %v822, %v708
        %v825 = vmax.f32 %v823, %v712
        %v826 = vmax.f32 %v824, %v718
        %v827 = vmax.f32 %v825, %v722
        %v828 = vmax.f32 %v826, %v728
        %v829 = vmax.f32 %v827, %v732
        %v830 = vmax.f32 %v828, %v738
        %v831 = vmax.f32 %v829, %v742
        %v832 = vmax.f32 %v830, %v748
        %v833 = vmax.f32 %v831, %v752
        %v834 = vmax.f32 %v832, %v758
        %v835 = vmax.f32 %v833, %v762
        %v836 = vmax.f32 %v834, %v768
        %v837 = vmax.f32 %v835, %v772
        %v838 = vmax.f32 %v836, %v778
        %v839 = vmax.f32 %v837, %v782
        %v840 = vmax.f32 %v838, %v788
        %v841 = vmax.f32 %v839, %v792
        %v842 = vmax.f32 %v840, %v798
        %v843 = vmax.f32 %v841, %v802
        %v844 = vmax.f32 %v842, %v808
        %v845 = vmax.f32 %v843, %v812
        %v846 = vmax.f32 %v844, %v845
        %v847 = vrot.slane %v846, 4
        %v848 = vmax.f32 %v846, %v847
        %v849 = vrot.slane %v848, 2
        %v850 = vmax.f32 %v848, %v849
        %v851 = vrot.slane %v850, 1
        %v852 = vmax.f32 %v850, %v851
        %v853 = vmax.f32 %v660, %v670
        %v854 = vmax.f32 %v664, %v674
        %v855 = vmax.f32 %v853, %v680
        %v856 = vmax.f32 %v854, %v684
        %v857 = vmax.f32 %v855, %v690
        %v858 = vmax.f32 %v856, %v694
        %v859 = vmax.f32 %v857, %v700
        %v860 = vmax.f32 %v858, %v704
        %v861 = vmax.f32 %v859, %v710
        %v862 = vmax.f32 %v860, %v714
        %v863 = vmax.f32 %v861, %v720
        %v864 = vmax.f32 %v862, %v724
        %v865 = vmax.f32 %v863, %v730
        %v866 = vmax.f32 %v864, %v734
        %v867 = vmax.f32 %v865, %v740
        %v868 = vmax.f32 %v866, %v744
        %v869 = vmax.f32 %v867, %v750
        %v870 = vmax.f32 %v868, %v754
        %v871 = vmax.f32 %v869, %v760
        %v872 = vmax.f32 %v870, %v764
        %v873 = vmax.f32 %v871, %v770
        %v874 = vmax.f32 %v872, %v774
        %v875 = vmax.f32 %v873, %v780
        %v876 = vmax.f32 %v874, %v784
        %v877 = vmax.f32 %v875, %v790
        %v878 = vmax.f32 %v876, %v794
        %v879 = vmax.f32 %v877, %v800
        %v880 = vmax.f32 %v878, %v804
        %v881 = vmax.f32 %v879, %v810
        %v882 = vmax.f32 %v880, %v814
        %v883 = vmax.f32 %v881, %v882
        %v884 = vrot.slane %v883, 4
        %v885 = vmax.f32 %v883, %v884
        %v886 = vrot.slane %v885, 2
        %v887 = vmax.f32 %v885, %v886
        %v888 = vrot.slane %v887, 1
        %v889 = vmax.f32 %v887, %v888
        %v890 = vsub.f32 %v658, %v852
        %v891 = vsub.f32 %v660, %v889
        %v892 = vsub.f32 %v662, %v852
        %v893 = vsub.f32 %v664, %v889
        %v894 = vsub.f32 %v668, %v852
        %v895 = vsub.f32 %v670, %v889
        %v896 = vsub.f32 %v672, %v852
        %v897 = vsub.f32 %v674, %v889
        %v898 = vsub.f32 %v678, %v852
        %v899 = vsub.f32 %v680, %v889
        %v900 = vsub.f32 %v682, %v852
        %v901 = vsub.f32 %v684, %v889
        %v902 = vsub.f32 %v688, %v852
        %v903 = vsub.f32 %v690, %v889
        %v904 = vsub.f32 %v692, %v852
        %v905 = vsub.f32 %v694, %v889
        %v906 = vsub.f32 %v698, %v852
        %v907 = vsub.f32 %v700, %v889
        %v908 = vsub.f32 %v702, %v852
        %v909 = vsub.f32 %v704, %v889
        %v910 = vsub.f32 %v708, %v852
        %v911 = vsub.f32 %v710, %v889
        %v912 = vsub.f32 %v712, %v852
        %v913 = vsub.f32 %v714, %v889
        %v914 = vsub.f32 %v718, %v852
        %v915 = vsub.f32 %v720, %v889
        %v916 = vsub.f32 %v722, %v852
        %v917 = vsub.f32 %v724, %v889
        %v918 = vsub.f32 %v728, %v852
        %v919 = vsub.f32 %v730, %v889
        %v920 = vsub.f32 %v732, %v852
        %v921 = vsub.f32 %v734, %v889
        %v922 = vsub.f32 %v738, %v852
        %v923 = vsub.f32 %v740, %v889
        %v924 = vsub.f32 %v742, %v852
        %v925 = vsub.f32 %v744, %v889
        %v926 = vsub.f32 %v748, %v852
        %v927 = vsub.f32 %v750, %v889
        %v928 = vsub.f32 %v752, %v852
        %v929 = vsub.f32 %v754, %v889
        %v930 = vsub.f32 %v758, %v852
        %v931 = vsub.f32 %v760, %v889
        %v932 = vsub.f32 %v762, %v852
        %v933 = vsub.f32 %v764, %v889
        %v934 = vsub.f32 %v768, %v852
        %v935 = vsub.f32 %v770, %v889
        %v936 = vsub.f32 %v772, %v852
        %v937 = vsub.f32 %v774, %v889
        %v938 = vsub.f32 %v778, %v852
        %v939 = vsub.f32 %v780, %v889
        %v940 = vsub.f32 %v782, %v852
        %v941 = vsub.f32 %v784, %v889
        %v942 = vsub.f32 %v788, %v852
        %v943 = vsub.f32 %v790, %v889
        %v944 = vsub.f32 %v792, %v852
        %v945 = vsub.f32 %v794, %v889
        %v946 = vsub.f32 %v798, %v852
        %v947 = vsub.f32 %v800, %v889
        %v948 = vsub.f32 %v802, %v852
        %v949 = vsub.f32 %v804, %v889
        %v950 = vsub.f32 %v808, %v852
        %v951 = vsub.f32 %v810, %v889
        %v952 = vsub.f32 %v812, %v852
        %v953 = vsub.f32 %v814, %v889
        %v954 = vmul.f32 %v890, 1.442695
        %v955 = vpow.pop %v954
        %v956 = vmul.f32 %v891, 1.442695
        %v957 = vpow.pop %v956
        %v958 = vmul.f32 %v892, 1.442695
        %v959 = vpow.pop %v958
        %v960 = vmul.f32 %v893, 1.442695
        %v961 = vpow.pop %v960
        %v962 = vmul.f32 %v894, 1.442695
        %v963 = vpow.pop %v962
        %v964 = vmul.f32 %v895, 1.442695
        %v965 = vpow.pop %v964
        %v966 = vmul.f32 %v896, 1.442695
        %v967 = vpow.pop %v966
        %v968 = vmul.f32 %v897, 1.442695
        %v969 = vpow.pop %v968
        %v970 = vmul.f32 %v898, 1.442695
        %v971 = vpow.pop %v970
        %v972 = vmul.f32 %v899, 1.442695
        %v973 = vpow.pop %v972
        %v974 = vmul.f32 %v900, 1.442695
        %v975 = vpow.pop %v974
        %v976 = vmul.f32 %v901, 1.442695
        %v977 = vpow.pop %v976
        %v978 = vmul.f32 %v902, 1.442695
        %v979 = vpow.pop %v978
        %v980 = vmul.f32 %v903, 1.442695
        %v981 = vpow.pop %v980
        %v982 = vmul.f32 %v904, 1.442695
        %v983 = vpow.pop %v982
        %v984 = vmul.f32 %v905, 1.442695
        %v985 = vpow.pop %v984
        %v986 = vmul.f32 %v906, 1.442695
        %v987 = vpow.pop %v986
        %v988 = vmul.f32 %v907, 1.442695
        %v989 = vpow.pop %v988
        %v990 = vmul.f32 %v908, 1.442695
        %v991 = vpow.pop %v990
        %v992 = vmul.f32 %v909, 1.442695
        %v993 = vpow.pop %v992
        %v994 = vmul.f32 %v910, 1.442695
        %v995 = vpow.pop %v994
        %v996 = vmul.f32 %v911, 1.442695
        %v997 = vpow.pop %v996
        %v998 = vmul.f32 %v912, 1.442695
        %v999 = vpow.pop %v998
        %v1000 = vmul.f32 %v913, 1.442695
        %v1001 = vpow.pop %v1000
        %v1002 = vmul.f32 %v914, 1.442695
        %v1003 = vpow.pop %v1002
        %v1004 = vmul.f32 %v915, 1.442695
        %v1005 = vpow.pop %v1004
        %v1006 = vmul.f32 %v916, 1.442695
        %v1007 = vpow.pop %v1006
        %v1008 = vmul.f32 %v917, 1.442695
        %v1009 = vpow.pop %v1008
        %v1010 = vmul.f32 %v918, 1.442695
        %v1011 = vpow.pop %v1010
        %v1012 = vmul.f32 %v919, 1.442695
        %v1013 = vpow.pop %v1012
        %v1014 = vmul.f32 %v920, 1.442695
        %v1015 = vpow.pop %v1014
        %v1016 = vmul.f32 %v921, 1.442695
        %v1017 = vpow.pop %v1016
        %v1018 = vmul.f32 %v922, 1.442695
        %v1019 = vpow.pop %v1018
        %v1020 = vmul.f32 %v923, 1.442695
        %v1021 = vpow.pop %v1020
        %v1022 = vmul.f32 %v924, 1.442695
        %v1023 = vpow.pop %v1022
        %v1024 = vmul.f32 %v925, 1.442695
        %v1025 = vpow.pop %v1024
        %v1026 = vmul.f32 %v926, 1.442695
        %v1027 = vpow.pop %v1026
        %v1028 = vmul.f32 %v927, 1.442695
        %v1029 = vpow.pop %v1028
        %v1030 = vmul.f32 %v928, 1.442695
        %v1031 = vpow.pop %v1030
        %v1032 = vmul.f32 %v929, 1.442695
        %v1033 = vpow.pop %v1032
        %v1034 = vmul.f32 %v930, 1.442695
        %v1035 = vpow.pop %v1034
        %v1036 = vmul.f32 %v931, 1.442695
        %v1037 = vpow.pop %v1036
        %v1038 = vmul.f32 %v932, 1.442695
        %v1039 = vpow.pop %v1038
        %v1040 = vmul.f32 %v933, 1.442695
        %v1041 = vpow.pop %v1040
        %v1042 = vmul.f32 %v934, 1.442695
        %v1043 = vpow.pop %v1042
        %v1044 = vmul.f32 %v935, 1.442695
        %v1045 = vpow.pop %v1044
        %v1046 = vmul.f32 %v936, 1.442695
        %v1047 = vpow.pop %v1046
        %v1048 = vmul.f32 %v937, 1.442695
        %v1049 = vpow.pop %v1048
        %v1050 = vmul.f32 %v938, 1.442695
        %v1051 = vpow.pop %v1050
        %v1052 = vmul.f32 %v939, 1.442695
        %v1053 = vpow.pop %v1052
        %v1054 = vmul.f32 %v940, 1.442695
        %v1055 = vpow.pop %v1054
        %v1056 = vmul.f32 %v941, 1.442695
        %v1057 = vpow.pop %v1056
        %v1058 = vmul.f32 %v942, 1.442695
        %v1059 = vpow.pop %v1058
        %v1060 = vmul.f32 %v943, 1.442695
        %v1061 = vpow.pop %v1060
        %v1062 = vmul.f32 %v944, 1.442695
        %v1063 = vpow.pop %v1062
        %v1064 = vmul.f32 %v945, 1.442695
        %v1065 = vpow.pop %v1064
        %v1066 = vmul.f32 %v946, 1.442695
        %v1067 = vpow.pop %v1066
        %v1068 = vmul.f32 %v947, 1.442695
        %v1069 = vpow.pop %v1068
        %v1070 = vmul.f32 %v948, 1.442695
        %v1071 = vpow.pop %v1070
        %v1072 = vmul.f32 %v949, 1.442695
        %v1073 = vpow.pop %v1072
        %v1074 = vmul.f32 %v950, 1.442695
        %v1075 = vpow.pop %v1074
        %v1076 = vmul.f32 %v951, 1.442695
        %v1077 = vpow.pop %v1076
        %v1078 = vmul.f32 %v952, 1.442695
        %v1079 = vpow.pop %v1078
        %v1080 = vmul.f32 %v953, 1.442695
        %v1081 = vpow.pop %v1080
        %v1082 = vpack.c.bf16 %v959, %v955
        %v1083 = vpack.c.bf16 %v961, %v957
        %v1084 = vpack.c.bf16 %v967, %v963
        %v1085 = vpack.c.bf16 %v969, %v965
        %v1086 = vpack.c.bf16 %v975, %v971
        %v1087 = vpack.c.bf16 %v977, %v973
        %v1088 = vpack.c.bf16 %v983, %v979
        %v1089 = vpack.c.bf16 %v985, %v981
        %v1090 = vpack.c.bf16 %v991, %v987
        %v1091 = vpack.c.bf16 %v993, %v989
        %v1092 = vpack.c.bf16 %v999, %v995
        %v1093 = vpack.c.bf16 %v1001, %v997
        %v1094 = vpack.c.bf16 %v1007, %v1003
        %v1095 = vpack.c.bf16 %v1009, %v1005
        %v1096 = vpack.c.bf16 %v1015, %v1011
        %v1097 = vpack.c.bf16 %v1017, %v1013
        %v1098 = vpack.c.bf16 %v1023, %v1019
        %v1099 = vpack.c.bf16 %v1025, %v1021
        %v1100 = vpack.c.bf16 %v1031, %v1027
        %v1101 = vpack.c.bf16 %v1033, %v1029
        %v1102 = vpack.c.bf16 %v1039, %v1035
        %v1103 = vpack.c.bf16 %v1041, %v1037
        %v1104 = vpack.c.bf16 %v1047, %v1043
        %v1105 = vpack.c.bf16 %v1049, %v1045
        %v1106 = vpack.c.bf16 %v1055, %v1051
        %v1107 = vpack.c.bf16 %v1057, %v1053
        %v1108 = vpack.c.bf16 %v1063, %v1059
        %v1109 = vpack.c.bf16 %v1065, %v1061
        %v1110 = vpack.c.bf16 %v1071, %v1067
        %v1111 = vpack.c.bf16 %v1073, %v1069
        %v1112 = vpack.c.bf16 %v1079, %v1075
        %v1113 = vpack.c.bf16 %v1081, %v1077
        %v1114 = vld [vmem:[%s432] sm:$0xff]
        %v1115 = vld [vmem:[%s432 + $0x8] sm:$0x11]
        %v1118 = vunpack.c.l.b16 %v1114
        %v1119 = vunpack.c.h.b16 %v1114
        %v1120 = vunpack.c.l.b16 %v1115
        %v1121 = vunpack.c.h.b16 %v1115
        %v1122 = vpack.c.b16 %v1120, %v1118
        %v1123 = vpack.c.b16 %v1121, %v1119
        %1126 = vmatprep.subr.bf16.mxu0 %v1083
        %1127 = vmatpush1.bf16.msra.mxu0 %v1082
        %1128 = vmatprep.subr.bf16.mxu0 %v1085
        %1129 = vmatpush1.bf16.msra.mxu0 %v1084
        %1130 = vmatprep.subr.bf16.mxu0 %v1087
        %1131 = vmatpush1.bf16.msra.mxu0 %v1086
        %1132 = vmatprep.subr.bf16.mxu0 %v1089
        %1133 = vmatpush1.bf16.msra.mxu0 %v1088
        %1134 = vmatprep.subr.bf16.mxu0 %v1091
        %1135 = vmatpush1.bf16.msra.mxu0 %v1090
        %1136 = vmatprep.subr.bf16.mxu0 %v1093
        %1137 = vmatpush1.bf16.msra.mxu0 %v1092
        %1138 = vmatprep.subr.bf16.mxu0 %v1095
        %1139 = vmatpush1.bf16.msra.mxu0 %v1094
        %1140 = vmatprep.subr.bf16.mxu0 %v1097
        %1141 = vmatpush1.bf16.msra.mxu0 %v1096
        %1142 = vmatprep.subr.bf16.mxu0 %v1099
        %1143 = vmatpush1.bf16.msra.mxu0 %v1098
        %1144 = vmatprep.subr.bf16.mxu0 %v1101
        %1145 = vmatpush1.bf16.msra.mxu0 %v1100
        %1146 = vmatprep.subr.bf16.mxu0 %v1103
        %1147 = vmatpush1.bf16.msra.mxu0 %v1102
        %1148 = vmatprep.subr.bf16.mxu0 %v1105
        %1149 = vmatpush1.bf16.msra.mxu0 %v1104
        %1150 = vmatprep.subr.bf16.mxu0 %v1107
        %1151 = vmatpush1.bf16.msra.mxu0 %v1106
        %1152 = vmatprep.subr.bf16.mxu0 %v1109
        %1153 = vmatpush1.bf16.msra.mxu0 %v1108
        %1154 = vmatprep.subr.bf16.mxu0 %v1111
        %1155 = vmatpush1.bf16.msra.mxu0 %v1110
        %1156 = vmatprep.subr.bf16.mxu0 %v1113
        %1157 = vmatpush1.bf16.msra.mxu0 %v1112
        %1158 = vmatprep.mubr.bf16.mxu0 %v1123
        %1159 = vmatmul.mubr.bf16.gmra.mrb[0].mxu0 %v1122
        %v1160 = vpop.f32.mrb[0].mxu0
        %v1161 = vadd.f32 0.0, %v1160
        %v1162 = vpop.f32.mrb[0].mxu0
        %v1163 = vadd.f32 0.0, %v1162
        %v1164 = vpop.f32.mrb[0].mxu0
        %v1165 = vadd.f32 0.0, %v1164
        %v1166 = vpop.f32.mrb[0].mxu0
        %v1167 = vadd.f32 0.0, %v1166
        %1168 = vdwg.mxu0
        %v1169 = vrcp.pop %v1165
        %v1170 = vrcp.pop %v1167
        %v1173 = vcombine.low %v1169, %v1170
        %v1175 = vunpack.c.l.s4 1966171168
        %v1176 = vunpack.c.0.s8 %v1175
        %v1177 = vlaneseq
        %v1178 = vshrl.u32 %v1177, 7
        %v1179 = vsub.s32 %v1176, %v1178
        %v1180 = vrot.slane %v1173, %v1179
        %v1182 = vunpack.c.l.s4 1966171168
        %v1183 = vunpack.c.0.s8 %v1182
        %v1184 = vlaneseq
        %v1185 = vshrl.u32 %v1184, 7
        %v1186 = vsub.s32 %v1183, %v1185
        %v1187 = vrot.slane %v1180, %v1186
        %v1189 = vmul.f32 %v453, %v1187
        %v1191 = vlaneseq
        %v1192 = vshrl.u32 %v1191, 7
        %v1193 = vsub.s32 0, %v1192
        %v1194 = vrot.slane %v1189, %v1193
        %v1195 = vlaneseq
        %v1196 = vshrl.u32 %v1195, 7
        %v1197 = vsub.s32 1, %v1196
        %v1198 = vrot.slane %v1189, %v1197
        %v1201 = vmul.f32 %v1161, %v1194
        %v1202 = vmul.f32 %v1163, %v1198
        %1204 = vset.pattern.permute.xlu0 0
        %1205 = vperm.xlu0 %1204, %v454
        %v1206 = vpop.permute.xlu0 %1205
        %v1208 = vadd.f32 %v1201, %v1206
        %v1209 = vadd.f32 %v1202, %v1206
        %v1210 = vsub.f32 1.0, %v453
        %v1211 = vld [vmem:[%s7] sm:$0xff]
        %v1212 = vld [vmem:[%s427] sm:$0xf]
        %v1213 = vld [vmem:[%s427 + $0x4] sm:$0xf]
        %v1214 = vld [vmem:[%s427 + $0x8] sm:$0xf]
        %v1215 = vld [vmem:[%s427 + $0xc] sm:$0xf]
        %v1216 = vld [vmem:[%s427 + $0x10] sm:$0xf]
        %v1217 = vld [vmem:[%s427 + $0x14] sm:$0xf]
        %v1218 = vld [vmem:[%s427 + $0x18] sm:$0xf]
        %v1219 = vld [vmem:[%s427 + $0x1c] sm:$0xf]
        %v1220 = vld [vmem:[%s427 + $0x20] sm:$0xf]
        %v1221 = vld [vmem:[%s427 + $0x24] sm:$0xf]
        %v1222 = vld [vmem:[%s427 + $0x28] sm:$0xf]
        %v1223 = vld [vmem:[%s427 + $0x2c] sm:$0xf]
        %v1224 = vld [vmem:[%s427 + $0x30] sm:$0xf]
        %v1225 = vld [vmem:[%s427 + $0x34] sm:$0xf]
        %v1226 = vld [vmem:[%s427 + $0x38] sm:$0xf]
        %v1227 = vld [vmem:[%s427 + $0x3c] sm:$0xf]
        %v1228 = vld [vmem:[%s427 + $0x40] sm:$0xf]
        %v1229 = vld [vmem:[%s427 + $0x44] sm:$0xf]
        %v1230 = vld [vmem:[%s427 + $0x48] sm:$0xf]
        %v1231 = vld [vmem:[%s427 + $0x4c] sm:$0xf]
        %v1232 = vld [vmem:[%s427 + $0x50] sm:$0xf]
        %v1233 = vld [vmem:[%s427 + $0x54] sm:$0xf]
        %v1234 = vld [vmem:[%s427 + $0x58] sm:$0xf]
        %v1235 = vld [vmem:[%s427 + $0x5c] sm:$0xf]
        %v1236 = vld [vmem:[%s427 + $0x60] sm:$0xf]
        %v1237 = vld [vmem:[%s427 + $0x64] sm:$0xf]
        %v1238 = vld [vmem:[%s427 + $0x68] sm:$0xf]
        %v1239 = vld [vmem:[%s427 + $0x6c] sm:$0xf]
        %v1240 = vld [vmem:[%s427 + $0x70] sm:$0xf]
        %v1241 = vld [vmem:[%s427 + $0x74] sm:$0xf]
        %v1242 = vld [vmem:[%s427 + $0x78] sm:$0xf]
        %v1243 = vld [vmem:[%s427 + $0x7c] sm:$0xf]
        %v1276 = vunpack.c.l.b16 %v1212
        %v1277 = vunpack.c.l.b16 %v1213
        %v1278 = vunpack.c.l.b16 %v1214
        %v1279 = vunpack.c.l.b16 %v1215
        %v1280 = vunpack.c.l.b16 %v1216
        %v1281 = vunpack.c.l.b16 %v1217
        %v1282 = vunpack.c.l.b16 %v1218
        %v1283 = vunpack.c.l.b16 %v1219
        %v1284 = vunpack.c.l.b16 %v1220
        %v1285 = vunpack.c.l.b16 %v1221
        %v1286 = vunpack.c.l.b16 %v1222
        %v1287 = vunpack.c.l.b16 %v1223
        %v1288 = vunpack.c.l.b16 %v1224
        %v1289 = vunpack.c.l.b16 %v1225
        %v1290 = vunpack.c.l.b16 %v1226
        %v1291 = vunpack.c.l.b16 %v1227
        %v1292 = vunpack.c.l.b16 %v1228
        %v1293 = vunpack.c.l.b16 %v1229
        %v1294 = vunpack.c.l.b16 %v1230
        %v1295 = vunpack.c.l.b16 %v1231
        %v1296 = vunpack.c.l.b16 %v1232
        %v1297 = vunpack.c.l.b16 %v1233
        %v1298 = vunpack.c.l.b16 %v1234
        %v1299 = vunpack.c.l.b16 %v1235
        %v1300 = vunpack.c.l.b16 %v1236
        %v1301 = vunpack.c.l.b16 %v1237
        %v1302 = vunpack.c.l.b16 %v1238
        %v1303 = vunpack.c.l.b16 %v1239
        %v1304 = vunpack.c.l.b16 %v1240
        %v1305 = vunpack.c.l.b16 %v1241
        %v1306 = vunpack.c.l.b16 %v1242
        %v1307 = vunpack.c.l.b16 %v1243
        %v1308 = vpack.c.b16 %v1277, %v1276
        %v1309 = vpack.c.b16 %v1279, %v1278
        %v1310 = vpack.c.b16 %v1281, %v1280
        %v1311 = vpack.c.b16 %v1283, %v1282
        %v1312 = vpack.c.b16 %v1285, %v1284
        %v1313 = vpack.c.b16 %v1287, %v1286
        %v1314 = vpack.c.b16 %v1289, %v1288
        %v1315 = vpack.c.b16 %v1291, %v1290
        %v1316 = vpack.c.b16 %v1293, %v1292
        %v1317 = vpack.c.b16 %v1295, %v1294
        %v1318 = vpack.c.b16 %v1297, %v1296
        %v1319 = vpack.c.b16 %v1299, %v1298
        %v1320 = vpack.c.b16 %v1301, %v1300
        %v1321 = vpack.c.b16 %v1303, %v1302
        %v1322 = vpack.c.b16 %v1305, %v1304
        %v1323 = vpack.c.b16 %v1307, %v1306
        %v1325 = vsel %vm567, %v1308, 0
        %v1328 = vsel %vm567, %v1309, 0
        %v1331 = vsel %vm567, %v1310, 0
        %v1334 = vsel %vm567, %v1311, 0
        %v1337 = vsel %vm567, %v1312, 0
        %v1340 = vsel %vm567, %v1313, 0
        %v1343 = vsel %vm567, %v1314, 0
        %v1346 = vsel %vm567, %v1315, 0
        %v1349 = vsel %vm567, %v1316, 0
        %v1352 = vsel %vm567, %v1317, 0
        %v1355 = vsel %vm567, %v1318, 0
        %v1358 = vsel %vm567, %v1319, 0
        %v1361 = vsel %vm567, %v1320, 0
        %v1364 = vsel %vm567, %v1321, 0
        %v1367 = vsel %vm567, %v1322, 0
        %v1370 = vsel %vm567, %v1323, 0
        %1372 = vmatprep.subr.bf16.mxu0 %v621
        %1373 = vmatpush1.bf16.msra.mxu0 %v618
        %1374 = vmatprep.subr.bf16.mxu0 0
        %1375 = vmatpush1.bf16.msra.mxu0 0
        %1376 = vmatprep.subr.bf16.mxu0 0
        %1377 = vmatpush1.bf16.msra.mxu0 0
        %1378 = vmatprep.subr.bf16.mxu0 0
        %1379 = vmatpush1.bf16.msra.mxu0 0
        %1380 = vmatprep.subr.bf16.mxu0 0
        %1381 = vmatpush1.bf16.msra.mxu0 0
        %1382 = vmatprep.subr.bf16.mxu0 0
        %1383 = vmatpush1.bf16.msra.mxu0 0
        %1384 = vmatprep.subr.bf16.mxu0 0
        %1385 = vmatpush1.bf16.msra.mxu0 0
        %1386 = vmatprep.subr.bf16.mxu0 0
        %1387 = vmatpush1.bf16.msra.mxu0 0
        %1388 = vmatprep.subr.bf16.mxu0 0
        %1389 = vmatpush1.bf16.msra.mxu0 0
        %1390 = vmatprep.subr.bf16.mxu0 0
        %1391 = vmatpush1.bf16.msra.mxu0 0
        %1392 = vmatprep.subr.bf16.mxu0 0
        %1393 = vmatpush1.bf16.msra.mxu0 0
        %1394 = vmatprep.subr.bf16.mxu0 0
        %1395 = vmatpush1.bf16.msra.mxu0 0
        %1396 = vmatprep.subr.bf16.mxu0 0
        %1397 = vmatpush1.bf16.msra.mxu0 0
        %1398 = vmatprep.subr.bf16.mxu0 0
        %1399 = vmatpush1.bf16.msra.mxu0 0
        %1400 = vmatprep.subr.bf16.mxu0 0
        %1401 = vmatpush1.bf16.msra.mxu0 0
        %1402 = vmatprep.subr.bf16.mxu0 0
        %1403 = vmatpush1.bf16.msra.mxu0 0
        %1404 = vmatprep.mubr.bf16.mxu0 0
        %1405 = vmatmul.mubr.bf16.gmra.mrb[0].mxu0 %v1325
        %v1406 = vpop.f32.mrb[0].mxu0
        %v1407 = vadd.f32 0.0, %v1406
        %v1408 = vpop.f32.mrb[0].mxu0
        %v1409 = vadd.f32 0.0, %v1408
        %v1410 = vpop.f32.mrb[0].mxu0
        %v1411 = vadd.f32 0.0, %v1410
        %v1412 = vpop.f32.mrb[0].mxu0
        %v1413 = vadd.f32 0.0, %v1412
        %1414 = vmatprep.mubr.bf16.mxu0 0
        %1415 = vmatmul.mubr.bf16.gmra.mrb[0].mxu0 %v1328
        %v1416 = vpop.f32.mrb[0].mxu0
        %v1417 = vadd.f32 0.0, %v1416
        %v1418 = vpop.f32.mrb[0].mxu0
        %v1419 = vadd.f32 0.0, %v1418
        %v1420 = vpop.f32.mrb[0].mxu0
        %v1421 = vadd.f32 0.0, %v1420
        %v1422 = vpop.f32.mrb[0].mxu0
        %v1423 = vadd.f32 0.0, %v1422
        %1424 = vmatprep.mubr.bf16.mxu0 0
        %1425 = vmatmul.mubr.bf16.gmra.mrb[0].mxu0 %v1331
        %v1426 = vpop.f32.mrb[0].mxu0
        %v1427 = vadd.f32 0.0, %v1426
        %v1428 = vpop.f32.mrb[0].mxu0
        %v1429 = vadd.f32 0.0, %v1428
        %v1430 = vpop.f32.mrb[0].mxu0
        %v1431 = vadd.f32 0.0, %v1430
        %v1432 = vpop.f32.mrb[0].mxu0
        %v1433 = vadd.f32 0.0, %v1432
        %1434 = vmatprep.mubr.bf16.mxu0 0
        %1435 = vmatmul.mubr.bf16.gmra.mrb[0].mxu0 %v1334
        %v1436 = vpop.f32.mrb[0].mxu0
        %v1437 = vadd.f32 0.0, %v1436
        %v1438 = vpop.f32.mrb[0].mxu0
        %v1439 = vadd.f32 0.0, %v1438
        %v1440 = vpop.f32.mrb[0].mxu0
        %v1441 = vadd.f32 0.0, %v1440
        %v1442 = vpop.f32.mrb[0].mxu0
        %v1443 = vadd.f32 0.0, %v1442
        %1444 = vmatprep.mubr.bf16.mxu0 0
        %1445 = vmatmul.mubr.bf16.gmra.mrb[0].mxu0 %v1337
        %v1446 = vpop.f32.mrb[0].mxu0
        %v1447 = vadd.f32 0.0, %v1446
        %v1448 = vpop.f32.mrb[0].mxu0
        %v1449 = vadd.f32 0.0, %v1448
        %v1450 = vpop.f32.mrb[0].mxu0
        %v1451 = vadd.f32 0.0, %v1450
        %v1452 = vpop.f32.mrb[0].mxu0
        %v1453 = vadd.f32 0.0, %v1452
        %1454 = vmatprep.mubr.bf16.mxu0 0
        %1455 = vmatmul.mubr.bf16.gmra.mrb[0].mxu0 %v1340
        %v1456 = vpop.f32.mrb[0].mxu0
        %v1457 = vadd.f32 0.0, %v1456
        %v1458 = vpop.f32.mrb[0].mxu0
        %v1459 = vadd.f32 0.0, %v1458
        %v1460 = vpop.f32.mrb[0].mxu0
        %v1461 = vadd.f32 0.0, %v1460
        %v1462 = vpop.f32.mrb[0].mxu0
        %v1463 = vadd.f32 0.0, %v1462
        %1464 = vmatprep.mubr.bf16.mxu0 0
        %1465 = vmatmul.mubr.bf16.gmra.mrb[0].mxu0 %v1343
        %v1466 = vpop.f32.mrb[0].mxu0
        %v1467 = vadd.f32 0.0, %v1466
        %v1468 = vpop.f32.mrb[0].mxu0
        %v1469 = vadd.f32 0.0, %v1468
        %v1470 = vpop.f32.mrb[0].mxu0
        %v1471 = vadd.f32 0.0, %v1470
        %v1472 = vpop.f32.mrb[0].mxu0
        %v1473 = vadd.f32 0.0, %v1472
        %1474 = vmatprep.mubr.bf16.mxu0 0
        %1475 = vmatmul.mubr.bf16.gmra.mrb[0].mxu0 %v1346
        %v1476 = vpop.f32.mrb[0].mxu0
        %v1477 = vadd.f32 0.0, %v1476
        %v1478 = vpop.f32.mrb[0].mxu0
        %v1479 = vadd.f32 0.0, %v1478
        %v1480 = vpop.f32.mrb[0].mxu0
        %v1481 = vadd.f32 0.0, %v1480
        %v1482 = vpop.f32.mrb[0].mxu0
        %v1483 = vadd.f32 0.0, %v1482
        %1484 = vmatprep.mubr.bf16.mxu0 0
        %1485 = vmatmul.mubr.bf16.gmra.mrb[0].mxu0 %v1349
        %v1486 = vpop.f32.mrb[0].mxu0
        %v1487 = vadd.f32 0.0, %v1486
        %v1488 = vpop.f32.mrb[0].mxu0
        %v1489 = vadd.f32 0.0, %v1488
        %v1490 = vpop.f32.mrb[0].mxu0
        %v1491 = vadd.f32 0.0, %v1490
        %v1492 = vpop.f32.mrb[0].mxu0
        %v1493 = vadd.f32 0.0, %v1492
        %1494 = vmatprep.mubr.bf16.mxu0 0
        %1495 = vmatmul.mubr.bf16.gmra.mrb[0].mxu0 %v1352
        %v1496 = vpop.f32.mrb[0].mxu0
        %v1497 = vadd.f32 0.0, %v1496
        %v1498 = vpop.f32.mrb[0].mxu0
        %v1499 = vadd.f32 0.0, %v1498
        %v1500 = vpop.f32.mrb[0].mxu0
        %v1501 = vadd.f32 0.0, %v1500
        %v1502 = vpop.f32.mrb[0].mxu0
        %v1503 = vadd.f32 0.0, %v1502
        %1504 = vmatprep.mubr.bf16.mxu0 0
        %1505 = vmatmul.mubr.bf16.gmra.mrb[0].mxu0 %v1355
        %v1506 = vpop.f32.mrb[0].mxu0
        %v1507 = vadd.f32 0.0, %v1506
        %v1508 = vpop.f32.mrb[0].mxu0
        %v1509 = vadd.f32 0.0, %v1508
        %v1510 = vpop.f32.mrb[0].mxu0
        %v1511 = vadd.f32 0.0, %v1510
        %v1512 = vpop.f32.mrb[0].mxu0
        %v1513 = vadd.f32 0.0, %v1512
        %1514 = vmatprep.mubr.bf16.mxu0 0
        %1515 = vmatmul.mubr.bf16.gmra.mrb[0].mxu0 %v1358
        %v1516 = vpop.f32.mrb[0].mxu0
        %v1517 = vadd.f32 0.0, %v1516
        %v1518 = vpop.f32.mrb[0].mxu0
        %v1519 = vadd.f32 0.0, %v1518
        %v1520 = vpop.f32.mrb[0].mxu0
        %v1521 = vadd.f32 0.0, %v1520
        %v1522 = vpop.f32.mrb[0].mxu0
        %v1523 = vadd.f32 0.0, %v1522
        %1524 = vmatprep.mubr.bf16.mxu0 0
        %1525 = vmatmul.mubr.bf16.gmra.mrb[0].mxu0 %v1361
        %v1526 = vpop.f32.mrb[0].mxu0
        %v1527 = vadd.f32 0.0, %v1526
        %v1528 = vpop.f32.mrb[0].mxu0
        %v1529 = vadd.f32 0.0, %v1528
        %v1530 = vpop.f32.mrb[0].mxu0
        %v1531 = vadd.f32 0.0, %v1530
        %v1532 = vpop.f32.mrb[0].mxu0
        %v1533 = vadd.f32 0.0, %v1532
        %1534 = vmatprep.mubr.bf16.mxu0 0
        %1535 = vmatmul.mubr.bf16.gmra.mrb[0].mxu0 %v1364
        %v1536 = vpop.f32.mrb[0].mxu0
        %v1537 = vadd.f32 0.0, %v1536
        %v1538 = vpop.f32.mrb[0].mxu0
        %v1539 = vadd.f32 0.0, %v1538
        %v1540 = vpop.f32.mrb[0].mxu0
        %v1541 = vadd.f32 0.0, %v1540
        %v1542 = vpop.f32.mrb[0].mxu0
        %v1543 = vadd.f32 0.0, %v1542
        %1544 = vmatprep.mubr.bf16.mxu0 0
        %1545 = vmatmul.mubr.bf16.gmra.mrb[0].mxu0 %v1367
        %v1546 = vpop.f32.mrb[0].mxu0
        %v1547 = vadd.f32 0.0, %v1546
        %v1548 = vpop.f32.mrb[0].mxu0
        %v1549 = vadd.f32 0.0, %v1548
        %v1550 = vpop.f32.mrb[0].mxu0
        %v1551 = vadd.f32 0.0, %v1550
        %v1552 = vpop.f32.mrb[0].mxu0
        %v1553 = vadd.f32 0.0, %v1552
        %1554 = vmatprep.mubr.bf16.mxu0 0
        %1555 = vmatmul.mubr.bf16.gmra.mrb[0].mxu0 %v1370
        %v1556 = vpop.f32.mrb[0].mxu0
        %v1557 = vadd.f32 0.0, %v1556
        %v1558 = vpop.f32.mrb[0].mxu0
        %v1559 = vadd.f32 0.0, %v1558
        %v1560 = vpop.f32.mrb[0].mxu0
        %v1561 = vadd.f32 0.0, %v1560
        %v1562 = vpop.f32.mrb[0].mxu0
        %v1563 = vadd.f32 0.0, %v1562
        %1564 = vdwg.mxu0
        %v1565 = vmax.f32 %v1407, %v1417
        %v1566 = vmax.f32 %v1411, %v1421
        %v1567 = vmax.f32 %v1565, %v1427
        %v1568 = vmax.f32 %v1566, %v1431
        %v1569 = vmax.f32 %v1567, %v1437
        %v1570 = vmax.f32 %v1568, %v1441
        %v1571 = vmax.f32 %v1569, %v1447
        %v1572 = vmax.f32 %v1570, %v1451
        %v1573 = vmax.f32 %v1571, %v1457
        %v1574 = vmax.f32 %v1572, %v1461
        %v1575 = vmax.f32 %v1573, %v1467
        %v1576 = vmax.f32 %v1574, %v1471
        %v1577 = vmax.f32 %v1575, %v1477
        %v1578 = vmax.f32 %v1576, %v1481
        %v1579 = vmax.f32 %v1577, %v1487
        %v1580 = vmax.f32 %v1578, %v1491
        %v1581 = vmax.f32 %v1579, %v1497
        %v1582 = vmax.f32 %v1580, %v1501
        %v1583 = vmax.f32 %v1581, %v1507
        %v1584 = vmax.f32 %v1582, %v1511
        %v1585 = vmax.f32 %v1583, %v1517
        %v1586 = vmax.f32 %v1584, %v1521
        %v1587 = vmax.f32 %v1585, %v1527
        %v1588 = vmax.f32 %v1586, %v1531
        %v1589 = vmax.f32 %v1587, %v1537
        %v1590 = vmax.f32 %v1588, %v1541
        %v1591 = vmax.f32 %v1589, %v1547
        %v1592 = vmax.f32 %v1590, %v1551
        %v1593 = vmax.f32 %v1591, %v1557
        %v1594 = vmax.f32 %v1592, %v1561
        %v1595 = vmax.f32 %v1593, %v1594
        %v1596 = vrot.slane %v1595, 4
        %v1597 = vmax.f32 %v1595, %v1596
        %v1598 = vrot.slane %v1597, 2
        %v1599 = vmax.f32 %v1597, %v1598
        %v1600 = vrot.slane %v1599, 1
        %v1601 = vmax.f32 %v1599, %v1600
        %v1602 = vmax.f32 %v1409, %v1419
        %v1603 = vmax.f32 %v1413, %v1423
        %v1604 = vmax.f32 %v1602, %v1429
        %v1605 = vmax.f32 %v1603, %v1433
        %v1606 = vmax.f32 %v1604, %v1439
        %v1607 = vmax.f32 %v1605, %v1443
        %v1608 = vmax.f32 %v1606, %v1449
        %v1609 = vmax.f32 %v1607, %v1453
        %v1610 = vmax.f32 %v1608, %v1459
        %v1611 = vmax.f32 %v1609, %v1463
        %v1612 = vmax.f32 %v1610, %v1469
        %v1613 = vmax.f32 %v1611, %v1473
        %v1614 = vmax.f32 %v1612, %v1479
        %v1615 = vmax.f32 %v1613, %v1483
        %v1616 = vmax.f32 %v1614, %v1489
        %v1617 = vmax.f32 %v1615, %v1493
        %v1618 = vmax.f32 %v1616, %v1499
        %v1619 = vmax.f32 %v1617, %v1503
        %v1620 = vmax.f32 %v1618, %v1509
        %v1621 = vmax.f32 %v1619, %v1513
        %v1622 = vmax.f32 %v1620, %v1519
        %v1623 = vmax.f32 %v1621, %v1523
        %v1624 = vmax.f32 %v1622, %v1529
        %v1625 = vmax.f32 %v1623, %v1533
        %v1626 = vmax.f32 %v1624, %v1539
        %v1627 = vmax.f32 %v1625, %v1543
        %v1628 = vmax.f32 %v1626, %v1549
        %v1629 = vmax.f32 %v1627, %v1553
        %v1630 = vmax.f32 %v1628, %v1559
        %v1631 = vmax.f32 %v1629, %v1563
        %v1632 = vmax.f32 %v1630, %v1631
        %v1633 = vrot.slane %v1632, 4
        %v1634 = vmax.f32 %v1632, %v1633
        %v1635 = vrot.slane %v1634, 2
        %v1636 = vmax.f32 %v1634, %v1635
        %v1637 = vrot.slane %v1636, 1
        %v1638 = vmax.f32 %v1636, %v1637
        %v1639 = vsub.f32 %v1407, %v1601
        %v1640 = vsub.f32 %v1409, %v1638
        %v1641 = vsub.f32 %v1411, %v1601
        %v1642 = vsub.f32 %v1413, %v1638
        %v1643 = vsub.f32 %v1417, %v1601
        %v1644 = vsub.f32 %v1419, %v1638
        %v1645 = vsub.f32 %v1421, %v1601
        %v1646 = vsub.f32 %v1423, %v1638
        %v1647 = vsub.f32 %v1427, %v1601
        %v1648 = vsub.f32 %v1429, %v1638
        %v1649 = vsub.f32 %v1431, %v1601
        %v1650 = vsub.f32 %v1433, %v1638
        %v1651 = vsub.f32 %v1437, %v1601
        %v1652 = vsub.f32 %v1439, %v1638
        %v1653 = vsub.f32 %v1441, %v1601
        %v1654 = vsub.f32 %v1443, %v1638
        %v1655 = vsub.f32 %v1447, %v1601
        %v1656 = vsub.f32 %v1449, %v1638
        %v1657 = vsub.f32 %v1451, %v1601
        %v1658 = vsub.f32 %v1453, %v1638
        %v1659 = vsub.f32 %v1457, %v1601
        %v1660 = vsub.f32 %v1459, %v1638
        %v1661 = vsub.f32 %v1461, %v1601
        %v1662 = vsub.f32 %v1463, %v1638
        %v1663 = vsub.f32 %v1467, %v1601
        %v1664 = vsub.f32 %v1469, %v1638
        %v1665 = vsub.f32 %v1471, %v1601
        %v1666 = vsub.f32 %v1473, %v1638
        %v1667 = vsub.f32 %v1477, %v1601
        %v1668 = vsub.f32 %v1479, %v1638
        %v1669 = vsub.f32 %v1481, %v1601
        %v1670 = vsub.f32 %v1483, %v1638
        %v1671 = vsub.f32 %v1487, %v1601
        %v1672 = vsub.f32 %v1489, %v1638
        %v1673 = vsub.f32 %v1491, %v1601
        %v1674 = vsub.f32 %v1493, %v1638
        %v1675 = vsub.f32 %v1497, %v1601
        %v1676 = vsub.f32 %v1499, %v1638
        %v1677 = vsub.f32 %v1501, %v1601
        %v1678 = vsub.f32 %v1503, %v1638
        %v1679 = vsub.f32 %v1507, %v1601
        %v1680 = vsub.f32 %v1509, %v1638
        %v1681 = vsub.f32 %v1511, %v1601
        %v1682 = vsub.f32 %v1513, %v1638
        %v1683 = vsub.f32 %v1517, %v1601
        %v1684 = vsub.f32 %v1519, %v1638
        %v1685 = vsub.f32 %v1521, %v1601
        %v1686 = vsub.f32 %v1523, %v1638
        %v1687 = vsub.f32 %v1527, %v1601
        %v1688 = vsub.f32 %v1529, %v1638
        %v1689 = vsub.f32 %v1531, %v1601
        %v1690 = vsub.f32 %v1533, %v1638
        %v1691 = vsub.f32 %v1537, %v1601
        %v1692 = vsub.f32 %v1539, %v1638
        %v1693 = vsub.f32 %v1541, %v1601
        %v1694 = vsub.f32 %v1543, %v1638
        %v1695 = vsub.f32 %v1547, %v1601
        %v1696 = vsub.f32 %v1549, %v1638
        %v1697 = vsub.f32 %v1551, %v1601
        %v1698 = vsub.f32 %v1553, %v1638
        %v1699 = vsub.f32 %v1557, %v1601
        %v1700 = vsub.f32 %v1559, %v1638
        %v1701 = vsub.f32 %v1561, %v1601
        %v1702 = vsub.f32 %v1563, %v1638
        %v1703 = vmul.f32 %v1639, 1.442695
        %v1704 = vpow.pop %v1703
        %v1705 = vmul.f32 %v1640, 1.442695
        %v1706 = vpow.pop %v1705
        %v1707 = vmul.f32 %v1641, 1.442695
        %v1708 = vpow.pop %v1707
        %v1709 = vmul.f32 %v1642, 1.442695
        %v1710 = vpow.pop %v1709
        %v1711 = vmul.f32 %v1643, 1.442695
        %v1712 = vpow.pop %v1711
        %v1713 = vmul.f32 %v1644, 1.442695
        %v1714 = vpow.pop %v1713
        %v1715 = vmul.f32 %v1645, 1.442695
        %v1716 = vpow.pop %v1715
        %v1717 = vmul.f32 %v1646, 1.442695
        %v1718 = vpow.pop %v1717
        %v1719 = vmul.f32 %v1647, 1.442695
        %v1720 = vpow.pop %v1719
        %v1721 = vmul.f32 %v1648, 1.442695
        %v1722 = vpow.pop %v1721
        %v1723 = vmul.f32 %v1649, 1.442695
        %v1724 = vpow.pop %v1723
        %v1725 = vmul.f32 %v1650, 1.442695
        %v1726 = vpow.pop %v1725
        %v1727 = vmul.f32 %v1651, 1.442695
        %v1728 = vpow.pop %v1727
        %v1729 = vmul.f32 %v1652, 1.442695
        %v1730 = vpow.pop %v1729
        %v1731 = vmul.f32 %v1653, 1.442695
        %v1732 = vpow.pop %v1731
        %v1733 = vmul.f32 %v1654, 1.442695
        %v1734 = vpow.pop %v1733
        %v1735 = vmul.f32 %v1655, 1.442695
        %v1736 = vpow.pop %v1735
        %v1737 = vmul.f32 %v1656, 1.442695
        %v1738 = vpow.pop %v1737
        %v1739 = vmul.f32 %v1657, 1.442695
        %v1740 = vpow.pop %v1739
        %v1741 = vmul.f32 %v1658, 1.442695
        %v1742 = vpow.pop %v1741
        %v1743 = vmul.f32 %v1659, 1.442695
        %v1744 = vpow.pop %v1743
        %v1745 = vmul.f32 %v1660, 1.442695
        %v1746 = vpow.pop %v1745
        %v1747 = vmul.f32 %v1661, 1.442695
        %v1748 = vpow.pop %v1747
        %v1749 = vmul.f32 %v1662, 1.442695
        %v1750 = vpow.pop %v1749
        %v1751 = vmul.f32 %v1663, 1.442695
        %v1752 = vpow.pop %v1751
        %v1753 = vmul.f32 %v1664, 1.442695
        %v1754 = vpow.pop %v1753
        %v1755 = vmul.f32 %v1665, 1.442695
        %v1756 = vpow.pop %v1755
        %v1757 = vmul.f32 %v1666, 1.442695
        %v1758 = vpow.pop %v1757
        %v1759 = vmul.f32 %v1667, 1.442695
        %v1760 = vpow.pop %v1759
        %v1761 = vmul.f32 %v1668, 1.442695
        %v1762 = vpow.pop %v1761
        %v1763 = vmul.f32 %v1669, 1.442695
        %v1764 = vpow.pop %v1763
        %v1765 = vmul.f32 %v1670, 1.442695
        %v1766 = vpow.pop %v1765
        %v1767 = vmul.f32 %v1671, 1.442695
        %v1768 = vpow.pop %v1767
        %v1769 = vmul.f32 %v1672, 1.442695
        %v1770 = vpow.pop %v1769
        %v1771 = vmul.f32 %v1673, 1.442695
        %v1772 = vpow.pop %v1771
        %v1773 = vmul.f32 %v1674, 1.442695
        %v1774 = vpow.pop %v1773
        %v1775 = vmul.f32 %v1675, 1.442695
        %v1776 = vpow.pop %v1775
        %v1777 = vmul.f32 %v1676, 1.442695
        %v1778 = vpow.pop %v1777
        %v1779 = vmul.f32 %v1677, 1.442695
        %v1780 = vpow.pop %v1779
        %v1781 = vmul.f32 %v1678, 1.442695
        %v1782 = vpow.pop %v1781
        %v1783 = vmul.f32 %v1679, 1.442695
        %v1784 = vpow.pop %v1783
        %v1785 = vmul.f32 %v1680, 1.442695
        %v1786 = vpow.pop %v1785
        %v1787 = vmul.f32 %v1681, 1.442695
        %v1788 = vpow.pop %v1787
        %v1789 = vmul.f32 %v1682, 1.442695
        %v1790 = vpow.pop %v1789
        %v1791 = vmul.f32 %v1683, 1.442695
        %v1792 = vpow.pop %v1791
        %v1793 = vmul.f32 %v1684, 1.442695
        %v1794 = vpow.pop %v1793
        %v1795 = vmul.f32 %v1685, 1.442695
        %v1796 = vpow.pop %v1795
        %v1797 = vmul.f32 %v1686, 1.442695
        %v1798 = vpow.pop %v1797
        %v1799 = vmul.f32 %v1687, 1.442695
        %v1800 = vpow.pop %v1799
        %v1801 = vmul.f32 %v1688, 1.442695
        %v1802 = vpow.pop %v1801
        %v1803 = vmul.f32 %v1689, 1.442695
        %v1804 = vpow.pop %v1803
        %v1805 = vmul.f32 %v1690, 1.442695
        %v1806 = vpow.pop %v1805
        %v1807 = vmul.f32 %v1691, 1.442695
        %v1808 = vpow.pop %v1807
        %v1809 = vmul.f32 %v1692, 1.442695
        %v1810 = vpow.pop %v1809
        %v1811 = vmul.f32 %v1693, 1.442695
        %v1812 = vpow.pop %v1811
        %v1813 = vmul.f32 %v1694, 1.442695
        %v1814 = vpow.pop %v1813
        %v1815 = vmul.f32 %v1695, 1.442695
        %v1816 = vpow.pop %v1815
        %v1817 = vmul.f32 %v1696, 1.442695
        %v1818 = vpow.pop %v1817
        %v1819 = vmul.f32 %v1697, 1.442695
        %v1820 = vpow.pop %v1819
        %v1821 = vmul.f32 %v1698, 1.442695
        %v1822 = vpow.pop %v1821
        %v1823 = vmul.f32 %v1699, 1.442695
        %v1824 = vpow.pop %v1823
        %v1825 = vmul.f32 %v1700, 1.442695
        %v1826 = vpow.pop %v1825
        %v1827 = vmul.f32 %v1701, 1.442695
        %v1828 = vpow.pop %v1827
        %v1829 = vmul.f32 %v1702, 1.442695
        %v1830 = vpow.pop %v1829
        %v1831 = vpack.c.bf16 %v1708, %v1704
        %v1832 = vpack.c.bf16 %v1710, %v1706
        %v1833 = vpack.c.bf16 %v1716, %v1712
        %v1834 = vpack.c.bf16 %v1718, %v1714
        %v1835 = vpack.c.bf16 %v1724, %v1720
        %v1836 = vpack.c.bf16 %v1726, %v1722
        %v1837 = vpack.c.bf16 %v1732, %v1728
        %v1838 = vpack.c.bf16 %v1734, %v1730
        %v1839 = vpack.c.bf16 %v1740, %v1736
        %v1840 = vpack.c.bf16 %v1742, %v1738
        %v1841 = vpack.c.bf16 %v1748, %v1744
        %v1842 = vpack.c.bf16 %v1750, %v1746
        %v1843 = vpack.c.bf16 %v1756, %v1752
        %v1844 = vpack.c.bf16 %v1758, %v1754
        %v1845 = vpack.c.bf16 %v1764, %v1760
        %v1846 = vpack.c.bf16 %v1766, %v1762
        %v1847 = vpack.c.bf16 %v1772, %v1768
        %v1848 = vpack.c.bf16 %v1774, %v1770
        %v1849 = vpack.c.bf16 %v1780, %v1776
        %v1850 = vpack.c.bf16 %v1782, %v1778
        %v1851 = vpack.c.bf16 %v1788, %v1784
        %v1852 = vpack.c.bf16 %v1790, %v1786
        %v1853 = vpack.c.bf16 %v1796, %v1792
        %v1854 = vpack.c.bf16 %v1798, %v1794
        %v1855 = vpack.c.bf16 %v1804, %v1800
        %v1856 = vpack.c.bf16 %v1806, %v1802
        %v1857 = vpack.c.bf16 %v1812, %v1808
        %v1858 = vpack.c.bf16 %v1814, %v1810
        %v1859 = vpack.c.bf16 %v1820, %v1816
        %v1860 = vpack.c.bf16 %v1822, %v1818
        %v1861 = vpack.c.bf16 %v1828, %v1824
        %v1862 = vpack.c.bf16 %v1830, %v1826
        %v1863 = vld [vmem:[%s437] sm:$0xff]
        %v1864 = vld [vmem:[%s437 + $0x8] sm:$0x11]
        %v1867 = vunpack.c.l.b16 %v1863
        %v1868 = vunpack.c.h.b16 %v1863
        %v1869 = vunpack.c.l.b16 %v1864
        %v1870 = vunpack.c.h.b16 %v1864
        %v1871 = vpack.c.b16 %v1869, %v1867
        %v1872 = vpack.c.b16 %v1870, %v1868
        %1875 = vmatprep.subr.bf16.mxu0 %v1832
        %1876 = vmatpush1.bf16.msra.mxu0 %v1831
        %1877 = vmatprep.subr.bf16.mxu0 %v1834
        %1878 = vmatpush1.bf16.msra.mxu0 %v1833
        %1879 = vmatprep.subr.bf16.mxu0 %v1836
        %1880 = vmatpush1.bf16.msra.mxu0 %v1835
        %1881 = vmatprep.subr.bf16.mxu0 %v1838
        %1882 = vmatpush1.bf16.msra.mxu0 %v1837
        %1883 = vmatprep.subr.bf16.mxu0 %v1840
        %1884 = vmatpush1.bf16.msra.mxu0 %v1839
        %1885 = vmatprep.subr.bf16.mxu0 %v1842
        %1886 = vmatpush1.bf16.msra.mxu0 %v1841
        %1887 = vmatprep.subr.bf16.mxu0 %v1844
        %1888 = vmatpush1.bf16.msra.mxu0 %v1843
        %1889 = vmatprep.subr.bf16.mxu0 %v1846
        %1890 = vmatpush1.bf16.msra.mxu0 %v1845
        %1891 = vmatprep.subr.bf16.mxu0 %v1848
        %1892 = vmatpush1.bf16.msra.mxu0 %v1847
        %1893 = vmatprep.subr.bf16.mxu0 %v1850
        %1894 = vmatpush1.bf16.msra.mxu0 %v1849
        %1895 = vmatprep.subr.bf16.mxu0 %v1852
        %1896 = vmatpush1.bf16.msra.mxu0 %v1851
        %1897 = vmatprep.subr.bf16.mxu0 %v1854
        %1898 = vmatpush1.bf16.msra.mxu0 %v1853
        %1899 = vmatprep.subr.bf16.mxu0 %v1856
        %1900 = vmatpush1.bf16.msra.mxu0 %v1855
        %1901 = vmatprep.subr.bf16.mxu0 %v1858
        %1902 = vmatpush1.bf16.msra.mxu0 %v1857
        %1903 = vmatprep.subr.bf16.mxu0 %v1860
        %1904 = vmatpush1.bf16.msra.mxu0 %v1859
        %1905 = vmatprep.subr.bf16.mxu0 %v1862
        %1906 = vmatpush1.bf16.msra.mxu0 %v1861
        %1907 = vmatprep.mubr.bf16.mxu0 %v1872
        %1908 = vmatmul.mubr.bf16.gmra.mrb[0].mxu0 %v1871
        %v1909 = vpop.f32.mrb[0].mxu0
        %v1910 = vadd.f32 0.0, %v1909
        %v1911 = vpop.f32.mrb[0].mxu0
        %v1912 = vadd.f32 0.0, %v1911
        %v1913 = vpop.f32.mrb[0].mxu0
        %v1914 = vadd.f32 0.0, %v1913
        %v1915 = vpop.f32.mrb[0].mxu0
        %v1916 = vadd.f32 0.0, %v1915
        %1917 = vdwg.mxu0
        %v1918 = vrcp.pop %v1914
        %v1919 = vrcp.pop %v1916
        %v1922 = vcombine.low %v1918, %v1919
        %v1924 = vunpack.c.l.s4 1966171168
        %v1925 = vunpack.c.0.s8 %v1924
        %v1926 = vlaneseq
        %v1927 = vshrl.u32 %v1926, 7
        %v1928 = vsub.s32 %v1925, %v1927
        %v1929 = vrot.slane %v1922, %v1928
        %v1931 = vunpack.c.l.s4 1966171168
        %v1932 = vunpack.c.0.s8 %v1931
        %v1933 = vlaneseq
        %v1934 = vshrl.u32 %v1933, 7
        %v1935 = vsub.s32 %v1932, %v1934
        %v1936 = vrot.slane %v1929, %v1935
        %v1938 = vmul.f32 %v1210, %v1936
        %v1940 = vlaneseq
        %v1941 = vshrl.u32 %v1940, 7
        %v1942 = vsub.s32 0, %v1941
        %v1943 = vrot.slane %v1938, %v1942
        %v1944 = vlaneseq
        %v1945 = vshrl.u32 %v1944, 7
        %v1946 = vsub.s32 1, %v1945
        %v1947 = vrot.slane %v1938, %v1946
        %v1950 = vmul.f32 %v1910, %v1943
        %v1951 = vmul.f32 %v1912, %v1947
        %1953 = vset.pattern.permute.xlu0 0
        %1954 = vperm.xlu0 %1953, %v1211
        %v1955 = vpop.permute.xlu0 %1954
        %v1957 = vadd.f32 %v1950, %v1955
        %v1958 = vadd.f32 %v1951, %v1955
        %v1959 = vadd.f32 %v1208, %v449
        %v1960 = vadd.f32 %v1209, %v450
        %v1961 = vadd.f32 %v1959, %v1957
        %v1962 = vadd.f32 %v1960, %v1958
        %1963 = vst [vmem:[%s407] sm:$0xff] %v1961
        %1964 = vst [vmem:[%s407 + $0x8] sm:$0xff] %v1962
        %s1965 = sand.u32 %s246, 1
        %s1966 = scalar_lea.sflag [#allocation3], %s1965
        %s1967 = sand.u32 %s246, 1
        %s1968 = smul.addr %s1967, 16
        %s1969 = scalar_lea.vmem [#allocation2], %s1968
        // Predicated region
        $region53: #{tpu_custom_call.1} parent=51 // pred_check
          %p1970 = pneg %p256
        $region54: #{tpu_custom_call.1} parent=51 // pred_check_branch
          %1972 = sbr.rel (%p1970) target = $region56
        $region55: #{tpu_custom_call.1} parent=51 // pred_region
          %s1973 = smul.u32 2, %s27
          %s1975 = ssub.s32 256, 256
          %1976 = vsyncadd %s1966, %s1975
          %s1977 = smul.addr %s26, 2
          %s1978 = sadd.s32 %s1973, %s1977
          %s1979 = smul.addr %s1978, 128
          %s1980 = scalar_lea.hbm %s8, %s1979
          %s1982 = sshll.u32 %s1969, 4
          %s1983 = int_to_ptr.vmem [resolvable:$true] %s1982
          %1985 = dma.vmem_to_hbm [thread:$0]  %s1983, 256, %s1980, %s1966
        $region56: #{tpu_custom_call.1} parent=51 // pred_fallthru
          _
      $region52: #{tpu_custom_call.1} parent=5 // pred_fallthru
        _
      %p1986 = scmp.le.s32.totalorder 2, %s17
      // Predicated region
      $region57: #{tpu_custom_call.1} parent=5 // pred_check
        %p1987 = pneg %p1986
      $region58: #{tpu_custom_call.1} parent=5 // pred_check_branch
        %1989 = sbr.rel (%p1987) target = $region60
      $region59: #{tpu_custom_call.1} parent=5 // pred_region
        %s1990 = ssub.s32 %s17, 2
        // Predicated region
        $region61: #{tpu_custom_call.1} parent=59 // pred_check
          %p1991 = pneg %p262
        $region62: #{tpu_custom_call.1} parent=59 // pred_check_branch
          %1993 = sbr.rel (%p1991) target = $region64
        $region63: #{tpu_custom_call.1} parent=59 // pred_region
          %s1994 = sand.u32 %s247, 1
          %s1995 = scalar_lea.sflag [#allocation3], %s1994
          %s1996 = sand.u32 %s247, 1
          %s1997 = smul.addr %s1996, 16
          %s1998 = scalar_lea.vmem [#allocation2], %s1997
          %1999 = dma.done %s1995, 256
        $region64: #{tpu_custom_call.1} parent=59 // pred_fallthru
          _
      $region60: #{tpu_custom_call.1} parent=5 // pred_fallthru
        _
    $region6: #{tpu_custom_call.1} parent=1 // loop_footer
      %s21 = sadd.s32 1, %s17
    $region7: #{tpu_custom_call.1} parent=1 // loop_footer_branch
      %16 = sbr.rel target = $region3
    $region8: #{tpu_custom_call.1} parent=1 // loop_exit
      _
    %2000 = vsyncpa [#allocation3], 1
    %s2001 = scalar_lea.sflag [#allocation3], 1
    %2002 = vsyncpa %s2001, 1

</llo_original>
